<compile_context>
chip_gen: v7x
topology: tpu7x:2x2x1
jax: 0.10.0
libtpu: 0.0.40
codegen_flags: <defaults>
</compile_context>

<pallas_src>
import jax
import jax.numpy as jnp
from jax.experimental import pallas as pl
from jax.experimental.pallas import tpu as pltpu


# ----------------------------- tiling helpers ------------------------------

_VMEM_LIMIT = 32 * 1024 * 1024  # leaves headroom on v7x (64 MiB phys); fine on v5e/v6e


def _choose_tiles(L, tile_l=None):
    """Pick the L tile (lane dim) and the halo-block width."""
    if tile_l is not None:
        TL = int(tile_l)
    elif L % 128 == 0:
        TL = 128
        for cand in (512, 384, 256, 128):   # biggest lane-aligned tile that divides L
            if L % cand == 0:
                TL = cand
                break
    else:
        TL = L                              # small / ragged L: single tile
    assert L % TL == 0, "L must be divisible by the chosen L tile"
    HB = 128 if TL % 128 == 0 else TL       # halo block width (lane granularity)
    assert TL % HB == 0
    return TL, HB


# ------------------- kernel A: scSE1 + conv1 + conv2 tower ------------------

def _conv_tower(xu, sk, g1, sw1, sb1, w1s, bn1s, bn1b, w2s, bn2s, bn2b,
                tile_l=None):
    """scSE1 -> Conv1d(3) -> BN -> ReLU -> Conv1d(3) -> BN -> ReLU, L-tiled."""
    N, Cin, L = xu.shape
    Cskip = sk.shape[1]
    C1 = Cin + Cskip
    C2 = bn1s.shape[0]
    TL, HB = _choose_tiles(L, tile_l)
    nL = L // TL
    r = TL // HB              # TL in units of halo blocks
    n_hb = L // HB
    width = HB + TL + HB      # extended (halo'd) tile width

    def conv3_bn_relu(a, w_ref, scale_ref, shift_ref):
        # One wide MXU matmul: 3 taps stacked on the output rows, recombined
        # with lane rolls (XLU) -> a single MXU push per conv and no shifted
        # copies of the activations.
        y_all = jnp.dot(w_ref[...], a.astype(jnp.bfloat16),
                        preferred_element_type=jnp.float32)          # (3*C2, width)
        y = (pltpu.roll(y_all[:C2], shift=1, axis=1)                 # tap uses x[l-1]
             + y_all[C2:2 * C2]                                      # tap uses x[l]
             + pltpu.roll(y_all[2 * C2:], shift=width - 1, axis=1))  # tap uses x[l+1]
        return jnp.maximum(y * scale_ref[...] + shift_ref[...], 0.0)

    def kernel(xl_ref, xc_ref, xr_ref, sl_ref, sc_ref, sr_ref,
               g_ref, sw_ref, sb_ref,
               w1_ref, s1_ref, b1_ref, w2_ref, s2_ref, b2_ref, o_ref):
        l = pl.program_id(1)

        # Fused channel concat of [x_up | skip] plus left/right halo blocks.
        a = jnp.concatenate(
            [jnp.concatenate([xl_ref[0], xc_ref[0], xr_ref[0]], axis=-1),
             jnp.concatenate([sl_ref[0], sc_ref[0], sr_ref[0]], axis=-1)],
            axis=0)                                                  # (C1, width) bf16

        # Positions outside [0, L) (clamped halo blocks at the sequence ends)
        # are zeroed -> reproduces Conv1d(padding=1) zero padding per tile.
        pos = jax.lax.broadcasted_iota(jnp.int32, (1, width), 1) + (l * TL - HB)
        valid = jnp.logical_and(pos >= 0, pos < L).astype(jnp.float32)

        # scSE #1:  x * (cSE + sSE).  cSE gate (needs global-L mean) is
        # precomputed outside; sSE = sigmoid(<sw, x> + sb) as a VPU multiply
        # plus a sublane reduction (no 1-wide matmul).
        sse = jax.nn.sigmoid(
            jnp.sum(a * sw_ref[...], axis=0, keepdims=True) + sb_ref[0])
        a = a * (g_ref[0] + sse) * valid

        y = conv3_bn_relu(a, w1_ref, s1_ref, b1_ref) * valid         # conv1+BN+ReLU
        y = conv3_bn_relu(y, w2_ref, s2_ref, b2_ref)                 # conv2+BN+ReLU

        o_ref[0] = y[:, HB:HB + TL].astype(o_ref.dtype)              # centre slice

    im_c = lambda n, l: (n, 0, l)
    im_l = lambda n, l: (n, 0, jnp.maximum(l * r - 1, 0))
    im_r = lambda n, l: (n, 0, jnp.minimum((l + 1) * r, n_hb - 1))
    im_w = lambda n, l: (0, 0)

    in_specs = [
        pl.BlockSpec((1, Cin, HB), im_l),                    # x_up  left halo
        pl.BlockSpec((1, Cin, TL), im_c),                    # x_up  centre
        pl.BlockSpec((1, Cin, HB), im_r),                    # x_up  right halo
        pl.BlockSpec((1, Cskip, HB), im_l),                  # skip  left halo
        pl.BlockSpec((1, Cskip, TL), im_c),                  # skip  centre
        pl.BlockSpec((1, Cskip, HB), im_r),                  # skip  right halo
        pl.BlockSpec((1, C1, 1), lambda n, l: (n, 0, 0)),    # cSE1 gate (precomputed)
        pl.BlockSpec((C1, 1), im_w),                         # sSE1 weight
        pl.BlockSpec(memory_space=pltpu.MemorySpace.SMEM),   # sSE1 bias (scalar)
        pl.BlockSpec((3 * C2, C1), im_w),                    # conv1 taps (stacked)
        pl.BlockSpec((C2, 1), im_w), pl.BlockSpec((C2, 1), im_w),   # BN1 scale/shift
        pl.BlockSpec((3 * C2, C2), im_w),                    # conv2 taps (stacked)
        pl.BlockSpec((C2, 1), im_w), pl.BlockSpec((C2, 1), im_w),   # BN2 scale/shift
    ]

    flops = 2 * N * L * 3 * C2 * (C1 + C2) + 12 * N * L * (C1 + C2)
    bytes_acc = (2 * N * C1 * (L + 2 * HB * nL)        # bf16 activations (+halo refetch)
                 + 2 * 3 * C2 * (C1 + C2)              # bf16 conv weights
                 + 4 * N * C2 * L                      # f32 output
                 + 4 * (2 * C1 + 4 * C2 + N * C1))     # small params / gates
    cost = pl.CostEstimate(flops=int(flops), transcendentals=int(N * L),
                           bytes_accessed=int(bytes_acc))

    return pl.pallas_call(
        kernel,
        out_shape=jax.ShapeDtypeStruct((N, C2, L), jnp.float32),
        grid_spec=pltpu.PrefetchScalarGridSpec(
            num_scalar_prefetch=0,
            grid=(N, nL),
            in_specs=in_specs,
            out_specs=pl.BlockSpec((1, C2, TL), im_c),
        ),
        compiler_params=pltpu.CompilerParams(
            dimension_semantics=("parallel", "parallel"),
            vmem_limit_bytes=_VMEM_LIMIT),
        cost_estimate=cost,
    )(xu, xu, xu, sk, sk, sk, g1, sw1, sb1, w1s, bn1s, bn1b, w2s, bn2s, bn2b)


# ---------------------- kernel B: scSE attention #2 --------------------------

def _scse_apply(y, g, sw, sb, tile_l=None):
    """out = y * (cSE_gate + sigmoid(<sw, y> + sb)), L-tiled, lane-dense."""
    N, C, L = y.shape
    TL, _ = _choose_tiles(L, tile_l)
    nL = L // TL

    def kernel(y_ref, g_ref, sw_ref, sb_ref, o_ref):
        yv = y_ref[0]
        sse = jax.nn.sigmoid(
            jnp.sum(yv * sw_ref[...], axis=0, keepdims=True) + sb_ref[0])
        o_ref[0] = (yv * (g_ref[0] + sse)).astype(o_ref.dtype)

    cost = pl.CostEstimate(flops=int(5 * N * C * L), transcendentals=int(N * L),
                           bytes_accessed=int(8 * N * C * L))
    return pl.pallas_call(
        kernel,
        out_shape=jax.ShapeDtypeStruct((N, C, L), jnp.float32),
        grid_spec=pltpu.PrefetchScalarGridSpec(
            num_scalar_prefetch=0,
            grid=(N, nL),
            in_specs=[pl.BlockSpec((1, C, TL), lambda n, l: (n, 0, l)),
                      pl.BlockSpec((1, C, 1), lambda n, l: (n, 0, 0)),
                      pl.BlockSpec((C, 1), lambda n, l: (0, 0)),
                      pl.BlockSpec(memory_space=pltpu.MemorySpace.SMEM)],
            out_specs=pl.BlockSpec((1, C, TL), lambda n, l: (n, 0, l)),
        ),
        compiler_params=pltpu.CompilerParams(
            dimension_semantics=("parallel", "parallel"),
            vmem_limit_bytes=_VMEM_LIMIT),
        cost_estimate=cost,
    )(y, g, sw, sb)


# ------------------------------ forward pass --------------------------------

def decoder_block_forward(x, skip, params, tile_l=None):
    """DecoderBlock.forward (skip path, scale_factor=2, eval-mode BatchNorm)."""
    N, Cin, Lin = x.shape
    Cskip = skip.shape[1]
    L = 2 * Lin
    assert skip.shape == (N, Cskip, L)
    C1 = Cin + Cskip
    C2 = params["bn1_scale"].shape[0]

    # Nearest-x2 upsample: cheap layout glue kept in plain JAX; the channel
    # concat with `skip` is fused inside the kernel (separate BlockSpecs).
    xu = jnp.repeat(x, 2, axis=-1)

    # attention1 cSE gate needs a global mean over L -> precompute it here
    # (tiny (N, C) math) and feed it to the kernel as a (N, C, 1) input.
    m1 = jnp.concatenate([jnp.mean(xu, axis=-1), jnp.mean(skip, axis=-1)], axis=-1)
    z1 = jnp.maximum(m1 @ params["a1_w1"] + params["a1_b1"], 0.0)
    g1 = jax.nn.sigmoid(z1 @ params["a1_w2"] + params["a1_b2"])[:, :, None]

    # bf16 operands for the MXU (accumulation / BN / VPU math stay f32).
    xu_b = xu.astype(jnp.bfloat16)
    sk_b = skip.astype(jnp.bfloat16)
    w1s = params["c1_w"].reshape(3 * C2, C1).astype(jnp.bfloat16)
    w2s = params["c2_w"].reshape(3 * C2, C2).astype(jnp.bfloat16)

    y2 = _conv_tower(xu_b, sk_b, g1, params["a1_sw"], params["a1_sb"],
                     w1s, params["bn1_scale"], params["bn1_shift"],
                     w2s, params["bn2_scale"], params["bn2_shift"],
                     tile_l=tile_l)

    # attention2 cSE gate: needs the global-L mean of the conv-tower output,
    # so it is a cheap plain-JAX reduction between the two pallas_calls.
    m2 = jnp.mean(y2, axis=-1)
    z2 = jnp.maximum(m2 @ params["a2_w1"] + params["a2_b1"], 0.0)
    g2 = jax.nn.sigmoid(z2 @ params["a2_w2"] + params["a2_b2"])[:, :, None]

    return _scse_apply(y2, g2, params["a2_sw"], params["a2_sb"], tile_l=tile_l)


# --------------------------- deterministic params ---------------------------

def init_params(key, c_in, c_skip, c_out, reduction=16, eps=1e-5):
    c1 = c_in + c_skip
    s1 = max(c1 // reduction, 1)
    s2 = max(c_out // reduction, 1)
    ks = jax.random.split(key, 14)
    nrm = lambda k, shape, s=0.1: s * jax.random.normal(k, shape, jnp.float32)

    p = {}
    # attention1 (scSE over c1 channels)
    p["a1_w1"] = nrm(ks[0], (c1, s1));    p["a1_b1"] = nrm(ks[1], (s1,))
    p["a1_w2"] = nrm(ks[2], (s1, c1));    p["a1_b2"] = nrm(ks[3], (c1,))
    p["a1_sw"] = nrm(ks[4], (c1, 1));     p["a1_sb"] = nrm(ks[5], (1,))
    # conv1 weight: w[k, co, ci] == torch_weight[co, ci, k]
    p["c1_w"] = nrm(ks[6], (3, c_out, c1))
    # eval-mode BatchNorm folded to per-channel scale/shift, NCL shape (C, 1)
    g1 = jnp.ones((c_out,), jnp.float32); b1 = jnp.zeros((c_out,), jnp.float32)
    m1 = 0.01 * jnp.arange(c_out, dtype=jnp.float32)
    v1 = 1.0 + 0.05 * jnp.arange(c_out, dtype=jnp.float32)
    sc1 = g1 / jnp.sqrt(v1 + eps)
    p["bn1_scale"] = sc1[:, None]; p["bn1_shift"] = (b1 - m1 * sc1)[:, None]
    p["c2_w"] = nrm(ks[7], (3, c_out, c_out))
    g2 = 1.0 + 0.02 * jnp.arange(c_out, dtype=jnp.float32)
    b2 = 0.01 * jnp.arange(c_out, dtype=jnp.float32)
    sc2 = g2 / jnp.sqrt(jnp.ones((c_out,), jnp.float32) + eps)
    p["bn2_scale"] = sc2[:, None]; p["bn2_shift"] = b2[:, None]
    # attention2 (scSE over c_out channels)
    p["a2_w1"] = nrm(ks[8], (c_out, s2)); p["a2_b1"] = nrm(ks[9], (s2,))
    p["a2_w2"] = nrm(ks[10], (s2, c_out)); p["a2_b2"] = nrm(ks[11], (c_out,))
    p["a2_sw"] = nrm(ks[12], (c_out, 1)); p["a2_sb"] = nrm(ks[13], (1,))
    return p


# ---------------------------- pure-JAX reference ----------------------------

def reference_forward(x, skip, p):
    """f32 reference mirroring the PyTorch module (eval-mode BN), NCL layout."""
    xu = jnp.repeat(x, 2, axis=-1)
    v = jnp.concatenate([xu, skip], axis=1)                  # (N, C1, L)

    def scse(v, w1, b1, w2, b2, sw, sb):
        m = jnp.mean(v, axis=-1)                             # (N, C)
        z = jnp.maximum(m @ w1 + b1, 0.0)
        cse = jax.nn.sigmoid(z @ w2 + b2)[:, :, None]        # (N, C, 1)
        sse = jax.nn.sigmoid(jnp.einsum("ncl,co->nol", v, sw) + sb[0])  # (N, 1, L)
        return v * cse + v * sse

    def conv3(v, w):                                         # w: (3, Cout, Cin)
        vp = jnp.pad(v, ((0, 0), (0, 0), (1, 1)))
        return (jnp.einsum("oc,ncl->nol", w[0], vp[:, :, :-2])
                + jnp.einsum("oc,ncl->nol", w[1], vp[:, :, 1:-1])
                + jnp.einsum("oc,ncl->nol", w[2], vp[:, :, 2:]))

    v = scse(v, p["a1_w1"], p["a1_b1"], p["a1_w2"], p["a1_b2"], p["a1_sw"], p["a1_sb"])
    v = jnp.maximum(conv3(v, p["c1_w"]) * p["bn1_scale"][None] + p["bn1_shift"][None], 0.0)
    v = jnp.maximum(conv3(v, p["c2_w"]) * p["bn2_scale"][None] + p["bn2_shift"][None], 0.0)
    v = scse(v, p["a2_w1"], p["a2_b1"], p["a2_w2"], p["a2_b2"], p["a2_sw"], p["a2_sb"])
    return v


# ----------------------------------- main -----------------------------------

def _run_case(key, N, c_in, c_skip, c_out, l_in, tile_l=None):
    kx, ks, kp = jax.random.split(key, 3)
    x = jax.random.normal(kx, (N, c_in, l_in), jnp.float32)
    skip = jax.random.normal(ks, (N, c_skip, 2 * l_in), jnp.float32)
    params = init_params(kp, c_in, c_skip, c_out)

    fwd = jax.jit(decoder_block_forward, static_argnames=("tile_l",))
    out = jax.block_until_ready(fwd(x, skip, params, tile_l=tile_l))
    ref = jax.block_until_ready(reference_forward(x, skip, params))

    assert out.shape == (N, c_out, 2 * l_in)
    err = jnp.max(jnp.abs(out - ref))
    # kernel uses bf16 MXU operands (per perf review) vs an f32 reference:
    # loose elementwise tolerance catches structural bugs (halo / mask / tap
    # errors are O(1)), the mean-error check catches systematic drift.
    assert jnp.allclose(out, ref, atol=1e-1, rtol=1e-1), f"max |err| = {err}"
    assert jnp.mean(jnp.abs(out - ref)) < 2.5e-2, "mean error too high"


if __name__ == "__main__":
    key = jax.random.PRNGKey(0)
    k1, k2 = jax.random.split(key)
    # small single-L-tile case
    _run_case(k1, N=2, c_in=16, c_skip=16, c_out=32, l_in=8)
    # multi-tile case: exercises the L-tiling grid, halo blocks and boundary masks
    _run_case(k2, N=1, c_in=16, c_skip=16, c_out=32, l_in=128, tile_l=128)
    print("KERNEL_OK")
</pallas_src>

<mosaic_0001>
module attributes {stable_mosaic.version = 11 : i64} {
  func.func @kernel(%arg0: i32, %arg1: i32, %arg2: memref<1x32x16xf32, #tpu.memory_space<vmem>>, %arg3: memref<1x32x1xf32, #tpu.memory_space<vmem>>, %arg4: memref<32x1xf32, #tpu.memory_space<vmem>>, %arg5: memref<1xf32, #tpu.memory_space<smem>>, %arg6: memref<1x32x16xf32, #tpu.memory_space<vmem>>) attributes {dimension_semantics = [#tpu.dimension_semantics<parallel>, #tpu.dimension_semantics<parallel>], iteration_bounds = array<i64: 2, 1>, scalar_prefetch = 0 : i64, scratch_operands = 0 : i64, tpu.core_type = #tpu.core_type<tc>, window_params = [{transform_indices = @transform_0, window_bounds = array<i64: 1, 32, 16>}, {transform_indices = @transform_1, window_bounds = array<i64: 1, 32, 1>}, {pipeline_mode = #tpu.pipeline_mode<synchronous>, transform_indices = @transform_2, window_bounds = array<i64: 32, 1>}, {transform_indices = @transform_3, window_bounds = array<i64: 1>}, {transform_indices = @transform_4, window_bounds = array<i64: 1, 32, 16>}]} {
    %c0 = arith.constant 0 : index
    %c0_0 = arith.constant 0 : index
    %c0_1 = arith.constant 0 : index
    %0 = vector.load %arg2[%c0, %c0_0, %c0_1] : memref<1x32x16xf32, #tpu.memory_space<vmem>>, vector<1x32x16xf32>
    %1 = vector.shape_cast %0 : vector<1x32x16xf32> to vector<32x16xf32>
    %c0_2 = arith.constant 0 : index
    %c0_3 = arith.constant 0 : index
    %2 = vector.load %arg4[%c0_2, %c0_3] : memref<32x1xf32, #tpu.memory_space<vmem>>, vector<32x1xf32>
    %3 = vector.broadcast %2 : vector<32x1xf32> to vector<32x16xf32>
    %4 = arith.mulf %1, %3 : vector<32x16xf32>
    %cst = arith.constant dense<0.000000e+00> : vector<16xf32>
    %5 = vector.multi_reduction <add>, %4, %cst [0] : vector<32x16xf32> to vector<16xf32>
    %6 = vector.shape_cast %5 : vector<16xf32> to vector<1x16xf32>
    %c0_4 = arith.constant 0 : index
    %7 = memref.load %arg5[%c0_4] : memref<1xf32, #tpu.memory_space<smem>>
    %8 = vector.broadcast %7 : f32 to vector<1x16xf32>
    %9 = arith.addf %6, %8 : vector<1x16xf32>
    %10 = arith.negf %9 : vector<1x16xf32>
    %11 = math.exp %10 : vector<1x16xf32>
    %cst_5 = arith.constant 1.000000e+00 : f32
    %12 = vector.broadcast %cst_5 : f32 to vector<1x16xf32>
    %13 = arith.addf %12, %11 : vector<1x16xf32>
    %14 = arith.divf %12, %13 : vector<1x16xf32>
    %c0_6 = arith.constant 0 : index
    %c0_7 = arith.constant 0 : index
    %c0_8 = arith.constant 0 : index
    %15 = vector.load %arg3[%c0_6, %c0_7, %c0_8] : memref<1x32x1xf32, #tpu.memory_space<vmem>>, vector<1x32x1xf32>
    %16 = vector.shape_cast %15 : vector<1x32x1xf32> to vector<32x1xf32>
    %17 = vector.broadcast %16 : vector<32x1xf32> to vector<32x16xf32>
    %18 = vector.broadcast %14 : vector<1x16xf32> to vector<32x16xf32>
    %19 = arith.addf %17, %18 : vector<32x16xf32>
    %20 = arith.mulf %1, %19 : vector<32x16xf32>
    %c0_9 = arith.constant 0 : index
    %c0_10 = arith.constant 0 : index
    %c0_11 = arith.constant 0 : index
    %21 = vector.load %arg6[%c0_9, %c0_10, %c0_11] : memref<1x32x16xf32, #tpu.memory_space<vmem>>, vector<1x32x16xf32>
    %22 = vector.shape_cast %21 : vector<1x32x16xf32> to vector<32x16xf32>
    %23 = vector.shape_cast %20 : vector<32x16xf32> to vector<1x32x16xf32>
    tpu.vector_store %arg6[%c0_9, %c0_10, %c0_11], %23 {strides = array<i32>} : memref<1x32x16xf32, #tpu.memory_space<vmem>>, vector<1x32x16xf32>,
    return
  }
  func.func @transform_0(%arg0: i32, %arg1: i32) -> (i32, i32, i32) {
    %c0_i32 = arith.constant 0 : i32
    %c0_i32_0 = arith.constant 0 : i32
    return %arg0, %c0_i32, %arg1 : i32, i32, i32
  }
  func.func @transform_1(%arg0: i32, %arg1: i32) -> (i32, i32, i32) {
    %c0_i32 = arith.constant 0 : i32
    %c0_i32_0 = arith.constant 0 : i32
    %c0_i32_1 = arith.constant 0 : i32
    return %arg0, %c0_i32, %c0_i32_0 : i32, i32, i32
  }
  func.func @transform_2(%arg0: i32, %arg1: i32) -> (i32, i32) {
    %c0_i32 = arith.constant 0 : i32
    %c0_i32_0 = arith.constant 0 : i32
    %c0_i32_1 = arith.constant 0 : i32
    return %c0_i32, %c0_i32_0 : i32, i32
  }
  func.func @transform_3(%arg0: i32, %arg1: i32) -> i32 {
    %c0_i32 = arith.constant 0 : i32
    %c0_i32_0 = arith.constant 0 : i32
    return %c0_i32 : i32
  }
  func.func @transform_4(%arg0: i32, %arg1: i32) -> (i32, i32, i32) {
    %c0_i32 = arith.constant 0 : i32
    %c0_i32_0 = arith.constant 0 : i32
    return %arg0, %c0_i32, %arg1 : i32, i32, i32
  }
}

module attributes {stable_mosaic.version = 11 : i64} {
  func.func @kernel(%arg0: i32, %arg1: i32, %arg2: memref<1x16x16xbf16, #tpu.memory_space<vmem>>, %arg3: memref<1x16x16xbf16, #tpu.memory_space<vmem>>, %arg4: memref<1x16x16xbf16, #tpu.memory_space<vmem>>, %arg5: memref<1x16x16xbf16, #tpu.memory_space<vmem>>, %arg6: memref<1x16x16xbf16, #tpu.memory_space<vmem>>, %arg7: memref<1x16x16xbf16, #tpu.memory_space<vmem>>, %arg8: memref<1x32x1xf32, #tpu.memory_space<vmem>>, %arg9: memref<32x1xf32, #tpu.memory_space<vmem>>, %arg10: memref<1xf32, #tpu.memory_space<smem>>, %arg11: memref<96x32xbf16, #tpu.memory_space<vmem>>, %arg12: memref<32x1xf32, #tpu.memory_space<vmem>>, %arg13: memref<32x1xf32, #tpu.memory_space<vmem>>, %arg14: memref<96x32xbf16, #tpu.memory_space<vmem>>, %arg15: memref<32x1xf32, #tpu.memory_space<vmem>>, %arg16: memref<32x1xf32, #tpu.memory_space<vmem>>, %arg17: memref<1x32x16xf32, #tpu.memory_space<vmem>>) attributes {dimension_semantics = [#tpu.dimension_semantics<parallel>, #tpu.dimension_semantics<parallel>], iteration_bounds = array<i64: 2, 1>, scalar_prefetch = 0 : i64, scratch_operands = 0 : i64, tpu.core_type = #tpu.core_type<tc>, window_params = [{transform_indices = @transform_0, window_bounds = array<i64: 1, 16, 16>}, {transform_indices = @transform_1, window_bounds = array<i64: 1, 16, 16>}, {transform_indices = @transform_2, window_bounds = array<i64: 1, 16, 16>}, {transform_indices = @transform_3, window_bounds = array<i64: 1, 16, 16>}, {transform_indices = @transform_4, window_bounds = array<i64: 1, 16, 16>}, {transform_indices = @transform_5, window_bounds = array<i64: 1, 16, 16>}, {transform_indices = @transform_6, window_bounds = array<i64: 1, 32, 1>}, {pipeline_mode = #tpu.pipeline_mode<synchronous>, transform_indices = @transform_7, window_bounds = array<i64: 32, 1>}, {transform_indices = @transform_8, window_bounds = array<i64: 1>}, {pipeline_mode = #tpu.pipeline_mode<synchronous>, transform_indices = @transform_9, window_bounds = array<i64: 96, 32>}, {pipeline_mode = #tpu.pipeline_mode<synchronous>, transform_indices = @transform_10, window_bounds = array<i64: 32, 1>}, {pipeline_mode = #tpu.pipeline_mode<synchronous>, transform_indices = @transform_11, window_bounds = array<i64: 32, 1>}, {pipeline_mode = #tpu.pipeline_mode<synchronous>, transform_indices = @transform_12, window_bounds = array<i64: 96, 32>}, {pipeline_mode = #tpu.pipeline_mode<synchronous>, transform_indices = @transform_13, window_bounds = array<i64: 32, 1>}, {pipeline_mode = #tpu.pipeline_mode<synchronous>, transform_indices = @transform_14, window_bounds = array<i64: 32, 1>}, {transform_indices = @transform_15, window_bounds = array<i64: 1, 32, 16>}]} {
    %c0 = arith.constant 0 : index
    %c0_0 = arith.constant 0 : index
    %c0_1 = arith.constant 0 : index
    %0 = vector.load %arg2[%c0, %c0_0, %c0_1] : memref<1x16x16xbf16, #tpu.memory_space<vmem>>, vector<1x16x16xbf16>
    %1 = vector.shape_cast %0 : vector<1x16x16xbf16> to vector<16x16xbf16>
    %c0_2 = arith.constant 0 : index
    %c0_3 = arith.constant 0 : index
    %c0_4 = arith.constant 0 : index
    %2 = vector.load %arg3[%c0_2, %c0_3, %c0_4] : memref<1x16x16xbf16, #tpu.memory_space<vmem>>, vector<1x16x16xbf16>
    %3 = vector.shape_cast %2 : vector<1x16x16xbf16> to vector<16x16xbf16>
    %c0_5 = arith.constant 0 : index
    %c0_6 = arith.constant 0 : index
    %c0_7 = arith.constant 0 : index
    %4 = vector.load %arg4[%c0_5, %c0_6, %c0_7] : memref<1x16x16xbf16, #tpu.memory_space<vmem>>, vector<1x16x16xbf16>
    %5 = vector.shape_cast %4 : vector<1x16x16xbf16> to vector<16x16xbf16>
    %6 = tpu.concatenate %1, %3, %5 in 1 : vector<16x16xbf16>, vector<16x16xbf16>, vector<16x16xbf16> -> vector<16x48xbf16>
    %c0_8 = arith.constant 0 : index
    %c0_9 = arith.constant 0 : index
    %c0_10 = arith.constant 0 : index
    %7 = vector.load %arg5[%c0_8, %c0_9, %c0_10] : memref<1x16x16xbf16, #tpu.memory_space<vmem>>, vector<1x16x16xbf16>
    %8 = vector.shape_cast %7 : vector<1x16x16xbf16> to vector<16x16xbf16>
    %c0_11 = arith.constant 0 : index
    %c0_12 = arith.constant 0 : index
    %c0_13 = arith.constant 0 : index
    %9 = vector.load %arg6[%c0_11, %c0_12, %c0_13] : memref<1x16x16xbf16, #tpu.memory_space<vmem>>, vector<1x16x16xbf16>
    %10 = vector.shape_cast %9 : vector<1x16x16xbf16> to vector<16x16xbf16>
    %c0_14 = arith.constant 0 : index
    %c0_15 = arith.constant 0 : index
    %c0_16 = arith.constant 0 : index
    %11 = vector.load %arg7[%c0_14, %c0_15, %c0_16] : memref<1x16x16xbf16, #tpu.memory_space<vmem>>, vector<1x16x16xbf16>
    %12 = vector.shape_cast %11 : vector<1x16x16xbf16> to vector<16x16xbf16>
    %13 = tpu.concatenate %8, %10, %12 in 1 : vector<16x16xbf16>, vector<16x16xbf16>, vector<16x16xbf16> -> vector<16x48xbf16>
    %14 = tpu.concatenate %6, %13 in 0 : vector<16x48xbf16>, vector<16x48xbf16> -> vector<32x48xbf16>
    %15 = tpu.iota {dimensions = array<i32: 1>} : vector<1x48xi32>
    %c16_i32 = arith.constant 16 : i32
    %16 = arith.muli %arg1, %c16_i32 : i32
    %c16_i32_17 = arith.constant 16 : i32
    %17 = arith.subi %16, %c16_i32_17 : i32
    %18 = vector.broadcast %17 : i32 to vector<1x48xi32>
    %19 = arith.addi %15, %18 : vector<1x48xi32>
    %c0_i32 = arith.constant 0 : i32
    %20 = vector.broadcast %c0_i32 : i32 to vector<1x48xi32>
    %21 = arith.cmpi sge, %19, %20 : vector<1x48xi32>
    %c16_i32_18 = arith.constant 16 : i32
    %22 = vector.broadcast %c16_i32_18 : i32 to vector<1x48xi32>
    %23 = arith.cmpi slt, %19, %22 : vector<1x48xi32>
    %24 = arith.andi %21, %23 : vector<1x48xi1>
    %25 = arith.extui %24 : vector<1x48xi1> to vector<1x48xi32>
    %26 = arith.sitofp %25 : vector<1x48xi32> to vector<1x48xf32>
    %c0_19 = arith.constant 0 : index
    %c0_20 = arith.constant 0 : index
    %27 = vector.load %arg9[%c0_19, %c0_20] : memref<32x1xf32, #tpu.memory_space<vmem>>, vector<32x1xf32>
    %28 = arith.extf %14 : vector<32x48xbf16> to vector<32x48xf32>
    %29 = vector.broadcast %27 : vector<32x1xf32> to vector<32x48xf32>
    %30 = arith.mulf %28, %29 : vector<32x48xf32>
    %cst = arith.constant dense<0.000000e+00> : vector<48xf32>
    %31 = vector.multi_reduction <add>, %30, %cst [0] : vector<32x48xf32> to vector<48xf32>
    %32 = vector.shape_cast %31 : vector<48xf32> to vector<1x48xf32>
    %c0_21 = arith.constant 0 : index
    %33 = memref.load %arg10[%c0_21] : memref<1xf32, #tpu.memory_space<smem>>
    %34 = vector.broadcast %33 : f32 to vector<1x48xf32>
    %35 = arith.addf %32, %34 : vector<1x48xf32>
    %36 = arith.negf %35 : vector<1x48xf32>
    %37 = math.exp %36 : vector<1x48xf32>
    %cst_22 = arith.constant 1.000000e+00 : f32
    %38 = vector.broadcast %cst_22 : f32 to vector<1x48xf32>
    %39 = arith.addf %38, %37 : vector<1x48xf32>
    %40 = arith.divf %38, %39 : vector<1x48xf32>
    %c0_23 = arith.constant 0 : index
    %c0_24 = arith.constant 0 : index
    %c0_25 = arith.constant 0 : index
    %41 = vector.load %arg8[%c0_23, %c0_24, %c0_25] : memref<1x32x1xf32, #tpu.memory_space<vmem>>, vector<1x32x1xf32>
    %42 = vector.shape_cast %41 : vector<1x32x1xf32> to vector<32x1xf32>
    %43 = vector.broadcast %42 : vector<32x1xf32> to vector<32x48xf32>
    %44 = vector.broadcast %40 : vector<1x48xf32> to vector<32x48xf32>
    %45 = arith.addf %43, %44 : vector<32x48xf32>
    %46 = arith.extf %14 : vector<32x48xbf16> to vector<32x48xf32>
    %47 = arith.mulf %46, %45 : vector<32x48xf32>
    %48 = vector.broadcast %26 : vector<1x48xf32> to vector<32x48xf32>
    %49 = arith.mulf %47, %48 : vector<32x48xf32>
    %c0_26 = arith.constant 0 : index
    %c0_27 = arith.constant 0 : index
    %50 = vector.load %arg11[%c0_26, %c0_27] : memref<96x32xbf16, #tpu.memory_space<vmem>>, vector<96x32xbf16>
    %51 = arith.truncf %49 : vector<32x48xf32> to vector<32x48xbf16>
    %cst_28 = arith.constant dense<0.000000e+00> : vector<96x48xf32>
    %52 = tpu.matmul %50, %51, %cst_28 {dimension_numbers = #tpu.dot_dimension_numbers<[1], [0], [0], [1], [0, 0, 1, 1], [], []>} : vector<96x32xbf16>, vector<32x48xbf16>, vector<96x48xf32> -> vector<96x48xf32>
    %53 = vector.extract_strided_slice %52 {offsets = [0, 0], sizes = [32, 48], strides = [1, 1]} : vector<96x48xf32> to vector<32x48xf32>
    %c1_i32 = arith.constant 1 : i32
    %54 = tpu.dynamic_rotate %53 by %c1_i32 dim 1 : vector<32x48xf32>, i32 -> vector<32x48xf32>
    %55 = vector.extract_strided_slice %52 {offsets = [32, 0], sizes = [32, 48], strides = [1, 1]} : vector<96x48xf32> to vector<32x48xf32>
    %56 = arith.addf %54, %55 : vector<32x48xf32>
    %57 = vector.extract_strided_slice %52 {offsets = [64, 0], sizes = [32, 48], strides = [1, 1]} : vector<96x48xf32> to vector<32x48xf32>
    %c47_i32 = arith.constant 47 : i32
    %58 = tpu.dynamic_rotate %57 by %c47_i32 dim 1 : vector<32x48xf32>, i32 -> vector<32x48xf32>
    %59 = arith.addf %56, %58 : vector<32x48xf32>
    %c0_29 = arith.constant 0 : index
    %c0_30 = arith.constant 0 : index
    %60 = vector.load %arg12[%c0_29, %c0_30] : memref<32x1xf32, #tpu.memory_space<vmem>>, vector<32x1xf32>
    %61 = vector.broadcast %60 : vector<32x1xf32> to vector<32x48xf32>
    %62 = arith.mulf %59, %61 : vector<32x48xf32>
    %c0_31 = arith.constant 0 : index
    %c0_32 = arith.constant 0 : index
    %63 = vector.load %arg13[%c0_31, %c0_32] : memref<32x1xf32, #tpu.memory_space<vmem>>, vector<32x1xf32>
    %64 = vector.broadcast %63 : vector<32x1xf32> to vector<32x48xf32>
    %65 = arith.addf %62, %64 : vector<32x48xf32>
    %cst_33 = arith.constant 0.000000e+00 : f32
    %66 = vector.broadcast %cst_33 : f32 to vector<32x48xf32>
    %67 = arith.maximumf %65, %66 : vector<32x48xf32>
    %68 = vector.broadcast %26 : vector<1x48xf32> to vector<32x48xf32>
    %69 = arith.mulf %67, %68 : vector<32x48xf32>
    %c0_34 = arith.constant 0 : index
    %c0_35 = arith.constant 0 : index
    %70 = vector.load %arg14[%c0_34, %c0_35] : memref<96x32xbf16, #tpu.memory_space<vmem>>, vector<96x32xbf16>
    %71 = arith.truncf %69 : vector<32x48xf32> to vector<32x48xbf16>
    %cst_36 = arith.constant dense<0.000000e+00> : vector<96x48xf32>
    %72 = tpu.matmul %70, %71, %cst_36 {dimension_numbers = #tpu.dot_dimension_numbers<[1], [0], [0], [1], [0, 0, 1, 1], [], []>} : vector<96x32xbf16>, vector<32x48xbf16>, vector<96x48xf32> -> vector<96x48xf32>
    %73 = vector.extract_strided_slice %72 {offsets = [0, 0], sizes = [32, 48], strides = [1, 1]} : vector<96x48xf32> to vector<32x48xf32>
    %c1_i32_37 = arith.constant 1 : i32
    %74 = tpu.dynamic_rotate %73 by %c1_i32_37 dim 1 : vector<32x48xf32>, i32 -> vector<32x48xf32>
    %75 = vector.extract_strided_slice %72 {offsets = [32, 0], sizes = [32, 48], strides = [1, 1]} : vector<96x48xf32> to vector<32x48xf32>
    %76 = arith.addf %74, %75 : vector<32x48xf32>
    %77 = vector.extract_strided_slice %72 {offsets = [64, 0], sizes = [32, 48], strides = [1, 1]} : vector<96x48xf32> to vector<32x48xf32>
    %c47_i32_38 = arith.constant 47 : i32
    %78 = tpu.dynamic_rotate %77 by %c47_i32_38 dim 1 : vector<32x48xf32>, i32 -> vector<32x48xf32>
    %79 = arith.addf %76, %78 : vector<32x48xf32>
    %c0_39 = arith.constant 0 : index
    %c0_40 = arith.constant 0 : index
    %80 = vector.load %arg15[%c0_39, %c0_40] : memref<32x1xf32, #tpu.memory_space<vmem>>, vector<32x1xf32>
    %81 = vector.broadcast %80 : vector<32x1xf32> to vector<32x48xf32>
    %82 = arith.mulf %79, %81 : vector<32x48xf32>
    %c0_41 = arith.constant 0 : index
    %c0_42 = arith.constant 0 : index
    %83 = vector.load %arg16[%c0_41, %c0_42] : memref<32x1xf32, #tpu.memory_space<vmem>>, vector<32x1xf32>
    %84 = vector.broadcast %83 : vector<32x1xf32> to vector<32x48xf32>
    %85 = arith.addf %82, %84 : vector<32x48xf32>
    %cst_43 = arith.constant 0.000000e+00 : f32
    %86 = vector.broadcast %cst_43 : f32 to vector<32x48xf32>
    %87 = arith.maximumf %85, %86 : vector<32x48xf32>
    %88 = vector.extract_strided_slice %87 {offsets = [0, 16], sizes = [32, 16], strides = [1, 1]} : vector<32x48xf32> to vector<32x16xf32>
    %c0_44 = arith.constant 0 : index
    %c0_45 = arith.constant 0 : index
    %c0_46 = arith.constant 0 : index
    %89 = vector.load %arg17[%c0_44, %c0_45, %c0_46] : memref<1x32x16xf32, #tpu.memory_space<vmem>>, vector<1x32x16xf32>
    %90 = vector.shape_cast %89 : vector<1x32x16xf32> to vector<32x16xf32>
    %91 = vector.shape_cast %88 : vector<32x16xf32> to vector<1x32x16xf32>
    tpu.vector_store %arg17[%c0_44, %c0_45, %c0_46], %91 {strides = array<i32>} : memref<1x32x16xf32, #tpu.memory_space<vmem>>, vector<1x32x16xf32>,
    return
  }
  func.func @transform_0(%arg0: i32, %arg1: i32) -> (i32, i32, i32) {
    %c1_i32 = arith.constant 1 : i32
    %0 = arith.muli %arg1, %c1_i32 : i32
    %c1_i32_0 = arith.constant 1 : i32
    %1 = arith.subi %0, %c1_i32_0 : i32
    %c0_i32 = arith.constant 0 : i32
    %2 = arith.maxsi %1, %c0_i32 : i32
    %c0_i32_1 = arith.constant 0 : i32
    %c0_i32_2 = arith.constant 0 : i32
    return %arg0, %c0_i32_1, %2 : i32, i32, i32
  }
  func.func @transform_1(%arg0: i32, %arg1: i32) -> (i32, i32, i32) {
    %c0_i32 = arith.constant 0 : i32
    %c0_i32_0 = arith.constant 0 : i32
    return %arg0, %c0_i32, %arg1 : i32, i32, i32
  }
  func.func @transform_2(%arg0: i32, %arg1: i32) -> (i32, i32, i32) {
    %c1_i32 = arith.constant 1 : i32
    %0 = arith.addi %arg1, %c1_i32 : i32
    %c1_i32_0 = arith.constant 1 : i32
    %1 = arith.muli %0, %c1_i32_0 : i32
    %c0_i32 = arith.constant 0 : i32
    %2 = arith.minsi %1, %c0_i32 : i32
    %c0_i32_1 = arith.constant 0 : i32
    %c0_i32_2 = arith.constant 0 : i32
    return %arg0, %c0_i32_1, %2 : i32, i32, i32
  }
  func.func @transform_3(%arg0: i32, %arg1: i32) -> (i32, i32, i32) {
    %c1_i32 = arith.constant 1 : i32
    %0 = arith.muli %arg1, %c1_i32 : i32
    %c1_i32_0 = arith.constant 1 : i32
    %1 = arith.subi %0, %c1_i32_0 : i32
    %c0_i32 = arith.constant 0 : i32
    %2 = arith.maxsi %1, %c0_i32 : i32
    %c0_i32_1 = arith.constant 0 : i32
    %c0_i32_2 = arith.constant 0 : i32
    return %arg0, %c0_i32_1, %2 : i32, i32, i32
  }
  func.func @transform_4(%arg0: i32, %arg1: i32) -> (i32, i32, i32) {
    %c0_i32 = arith.constant 0 : i32
    %c0_i32_0 = arith.constant 0 : i32
    return %arg0, %c0_i32, %arg1 : i32, i32, i32
  }
  func.func @transform_5(%arg0: i32, %arg1: i32) -> (i32, i32, i32) {
    %c1_i32 = arith.constant 1 : i32
    %0 = arith.addi %arg1, %c1_i32 : i32
    %c1_i32_0 = arith.constant 1 : i32
    %1 = arith.muli %0, %c1_i32_0 : i32
    %c0_i32 = arith.constant 0 : i32
    %2 = arith.minsi %1, %c0_i32 : i32
    %c0_i32_1 = arith.constant 0 : i32
    %c0_i32_2 = arith.constant 0 : i32
    return %arg0, %c0_i32_1, %2 : i32, i32, i32
  }
  func.func @transform_6(%arg0: i32, %arg1: i32) -> (i32, i32, i32) {
    %c0_i32 = arith.constant 0 : i32
    %c0_i32_0 = arith.constant 0 : i32
    %c0_i32_1 = arith.constant 0 : i32
    return %arg0, %c0_i32, %c0_i32_0 : i32, i32, i32
  }
  func.func @transform_7(%arg0: i32, %arg1: i32) -> (i32, i32) {
    %c0_i32 = arith.constant 0 : i32
    %c0_i32_0 = arith.constant 0 : i32
    %c0_i32_1 = arith.constant 0 : i32
    return %c0_i32, %c0_i32_0 : i32, i32
  }
  func.func @transform_8(%arg0: i32, %arg1: i32) -> i32 {
    %c0_i32 = arith.constant 0 : i32
    %c0_i32_0 = arith.constant 0 : i32
    return %c0_i32 : i32
  }
  func.func @transform_9(%arg0: i32, %arg1: i32) -> (i32, i32) {
    %c0_i32 = arith.constant 0 : i32
    %c0_i32_0 = arith.constant 0 : i32
    %c0_i32_1 = arith.constant 0 : i32
    return %c0_i32, %c0_i32_0 : i32, i32
  }
  func.func @transform_10(%arg0: i32, %arg1: i32) -> (i32, i32) {
    %c0_i32 = arith.constant 0 : i32
    %c0_i32_0 = arith.constant 0 : i32
    %c0_i32_1 = arith.constant 0 : i32
    return %c0_i32, %c0_i32_0 : i32, i32
  }
  func.func @transform_11(%arg0: i32, %arg1: i32) -> (i32, i32) {
    %c0_i32 = arith.constant 0 : i32
    %c0_i32_0 = arith.constant 0 : i32
    %c0_i32_1 = arith.constant 0 : i32
    return %c0_i32, %c0_i32_0 : i32, i32
  }
  func.func @transform_12(%arg0: i32, %arg1: i32) -> (i32, i32) {
    %c0_i32 = arith.constant 0 : i32
    %c0_i32_0 = arith.constant 0 : i32
    %c0_i32_1 = arith.constant 0 : i32
    return %c0_i32, %c0_i32_0 : i32, i32
  }
  func.func @transform_13(%arg0: i32, %arg1: i32) -> (i32, i32) {
    %c0_i32 = arith.constant 0 : i32
    %c0_i32_0 = arith.constant 0 : i32
    %c0_i32_1 = arith.constant 0 : i32
    return %c0_i32, %c0_i32_0 : i32, i32
  }
  func.func @transform_14(%arg0: i32, %arg1: i32) -> (i32, i32) {
    %c0_i32 = arith.constant 0 : i32
    %c0_i32_0 = arith.constant 0 : i32
    %c0_i32_1 = arith.constant 0 : i32
    return %c0_i32, %c0_i32_0 : i32, i32
  }
  func.func @transform_15(%arg0: i32, %arg1: i32) -> (i32, i32, i32) {
    %c0_i32 = arith.constant 0 : i32
    %c0_i32_0 = arith.constant 0 : i32
    return %arg0, %c0_i32, %arg1 : i32, i32, i32
  }
}

</mosaic_0001>

<llo_original>
// kernel: decoder_block_forward.3
$region0: #{decoder_block_forward.3}
  #allocation0 [shape = 'u32[]', space=smem, size = 0x4, offset = 0x4, fixed_abs, tag = 'smem constant byte address 0x4 - core index']
  #allocation1 [shape = 'u32[144,128]{1,0:T(1,128)}', space=vmem, size = 0x12000, scoped, tag = 'internal scratch']
  #allocation2 [shape = 'f32[1]{0:T(128)S(6)}', space=smem, size = 0x200, scoped, tag = 'scoped memory for decoder_block_forward.3']
  %s0 = inlined_call_operand.vmem [shape: f32[2,32,16], index: 0, kind: input, shape index: {}]
  %s1 = inlined_call_operand.vmem [shape: f32[2,32,1], index: 1, kind: input, shape index: {}]
  %s2 = inlined_call_operand.vmem [shape: f32[32,1], index: 2, kind: input, shape index: {}]
  %s3 = inlined_call_operand.<no memory space> [shape: f32[1], index: 3, kind: input, shape index: {}]
  %s4 = inlined_call_operand.vmem [shape: f32[2,32,16], index: 4, kind: output, shape index: {}]
  %s5 = sld [smem:[#allocation0]]
  $region49: #{decoder_block_forward.3} parent=0
    _
  %s7 = ssub.s32 1, %s5
  %s8 = scalar_select 0, %s7, %s5
  %9 = sst [smem:[#allocation2]] %s3
  loop: start=0, step=1, limit=4
  $region2: #{decoder_block_forward.3} parent=0 // loop_pre_header
    _
  $region3: #{decoder_block_forward.3} parent=0 // loop_header
    %s11 = sphi 0, %s15
    %p12 = scmp.ge.s32.totalorder %s11, 4
    %s18 = sphi 0, %s30
    %s19 = sphi 0, %s26
    %s20 = sphi 0, %s18
    %s21 = sphi 0, %s19
    %s22 = sphi 0, %s20
    %s23 = sphi 0, %s21
    %s35 = sphi 0, %s37
    %s38 = sphi 0, %s35
    %s39 = sphi 0, %s38
    %s55 = sphi 0, %s39
    %s61 = sphi 0, %s63
    %s64 = sphi 0, %s61
    %s65 = sphi 0, %s64
    %s81 = sphi 0, %s65
    %s85 = sphi 0, %s85
    %s87 = sphi 0, %s85
    %s88 = sphi 0, %s87
    %s102 = sphi 0, %s88
    %s106 = sphi 0, %s106
    %s108 = sphi 0, %s106
    %s109 = sphi 0, %s108
    %s123 = sphi 0, %s109
    %s131 = sphi 0, %s133
    %s134 = sphi 0, %s131
    %s135 = sphi 0, %s134
    %s151 = sphi 0, %s135
  $region4: #{decoder_block_forward.3} parent=0 // loop_header_branch
    %14 = sbr.rel (%p12) target = $region8
  $region5: #{decoder_block_forward.3} parent=0 // loop_body
    %s16 = ssub.s32 %s11, 1
    %s17 = ssub.s32 %s11, 2
    %s24 = sadd.s32 1, %s19
    %p25 = scmp.ge.s32.totalorder %s24, 1
    %s26 = scalar_select %p25, 0, %s24
    %s27 = sadd.s32 1, %s18
    %s28 = scalar_select %p25, %s27, %s18
    %p29 = scmp.ge.s32.totalorder %s28, 2
    %s30 = scalar_select %p29, 0, %s28
    %s31 = ssub.s32 %s18, %s30
    %s32 = ssub.s32 %s19, %s26
    %s33 = sor.u32 %s31, %s32
    %p34 = scmp.eq.s32.totalorder %s33, 0
    %s36 = sadd.s32 %s35, 1
    %s37 = scalar_select %p34, %s35, %s36
    %p40 = pneg %p34
    %p41 = scmp.eq.s32.totalorder %s11, 1
    %p42 = por %p40, %p41
    %p43 = scmp.ne.s32.totalorder %s35, %s38
    %p44 = scmp.eq.s32.totalorder %s11, 0
    %p45 = por %p43, %p44
    %p46 = scmp.ne.s32.totalorder %s35, %s38
    %p47 = scmp.eq.s32.totalorder %s16, 1
    %p48 = por %p46, %p47
    %p49 = scmp.ne.s32.totalorder %s38, %s39
    %p50 = scmp.eq.s32.totalorder %s16, 0
    %p51 = por %p49, %p50
    %p52 = scmp.ne.s32.totalorder %s38, %s39
    %p53 = scmp.eq.s32.totalorder %s17, 1
    %p54 = por %p52, %p53
    %p56 = scmp.ne.s32.totalorder %s39, %s55
    %p57 = scmp.eq.s32.totalorder %s17, 0
    %p58 = por %p56, %p57
    %s59 = ssub.s32 %s18, %s30
    %p60 = scmp.eq.s32.totalorder %s59, 0
    %s62 = sadd.s32 %s61, 1
    %s63 = scalar_select %p60, %s61, %s62
    %p66 = pneg %p60
    %p67 = scmp.eq.s32.totalorder %s11, 1
    %p68 = por %p66, %p67
    %p69 = scmp.ne.s32.totalorder %s61, %s64
    %p70 = scmp.eq.s32.totalorder %s11, 0
    %p71 = por %p69, %p70
    %p72 = scmp.ne.s32.totalorder %s61, %s64
    %p73 = scmp.eq.s32.totalorder %s16, 1
    %p74 = por %p72, %p73
    %p75 = scmp.ne.s32.totalorder %s64, %s65
    %p76 = scmp.eq.s32.totalorder %s16, 0
    %p77 = por %p75, %p76
    %p78 = scmp.ne.s32.totalorder %s64, %s65
    %p79 = scmp.eq.s32.totalorder %s17, 1
    %p80 = por %p78, %p79
    %p82 = scmp.ne.s32.totalorder %s65, %s81
    %p83 = scmp.eq.s32.totalorder %s17, 0
    %p84 = por %p82, %p83
    %s86 = sadd.s32 %s85, 1
    %p89 = scmp.eq.s32.totalorder %s11, 1
    %p90 = scmp.ne.s32.totalorder %s85, %s87
    %p91 = scmp.eq.s32.totalorder %s11, 0
    %p92 = por %p90, %p91
    %p93 = scmp.ne.s32.totalorder %s85, %s87
    %p94 = scmp.eq.s32.totalorder %s16, 1
    %p95 = por %p93, %p94
    %p96 = scmp.ne.s32.totalorder %s87, %s88
    %p97 = scmp.eq.s32.totalorder %s16, 0
    %p98 = por %p96, %p97
    %p99 = scmp.ne.s32.totalorder %s87, %s88
    %p100 = scmp.eq.s32.totalorder %s17, 1
    %p101 = por %p99, %p100
    %p103 = scmp.ne.s32.totalorder %s88, %s102
    %p104 = scmp.eq.s32.totalorder %s17, 0
    %p105 = por %p103, %p104
    %s107 = sadd.s32 %s106, 1
    %p110 = scmp.eq.s32.totalorder %s11, 1
    %p111 = scmp.ne.s32.totalorder %s106, %s108
    %p112 = scmp.eq.s32.totalorder %s11, 0
    %p113 = por %p111, %p112
    %p114 = scmp.ne.s32.totalorder %s106, %s108
    %p115 = scmp.eq.s32.totalorder %s16, 1
    %p116 = por %p114, %p115
    %p117 = scmp.ne.s32.totalorder %s108, %s109
    %p118 = scmp.eq.s32.totalorder %s16, 0
    %p119 = por %p117, %p118
    %p120 = scmp.ne.s32.totalorder %s108, %s109
    %p121 = scmp.eq.s32.totalorder %s17, 1
    %p122 = por %p120, %p121
    %p124 = scmp.ne.s32.totalorder %s109, %s123
    %p125 = scmp.eq.s32.totalorder %s17, 0
    %p126 = por %p124, %p125
    %s127 = ssub.s32 %s18, %s30
    %s128 = ssub.s32 %s19, %s26
    %s129 = sor.u32 %s127, %s128
    %p130 = scmp.eq.s32.totalorder %s129, 0
    %s132 = sadd.s32 %s131, 1
    %s133 = scalar_select %p130, %s131, %s132
    %p136 = pneg %p130
    %p137 = scmp.eq.s32.totalorder %s11, 1
    %p138 = por %p136, %p137
    %p139 = scmp.ne.s32.totalorder %s131, %s134
    %p140 = scmp.eq.s32.totalorder %s11, 0
    %p141 = por %p139, %p140
    %p142 = scmp.ne.s32.totalorder %s131, %s134
    %p143 = scmp.eq.s32.totalorder %s16, 1
    %p144 = por %p142, %p143
    %p145 = scmp.ne.s32.totalorder %s134, %s135
    %p146 = scmp.eq.s32.totalorder %s16, 0
    %p147 = por %p145, %p146
    %p148 = scmp.ne.s32.totalorder %s134, %s135
    %p149 = scmp.eq.s32.totalorder %s17, 1
    %p150 = por %p148, %p149
    %p152 = scmp.ne.s32.totalorder %s135, %s151
    %p153 = scmp.eq.s32.totalorder %s17, 0
    %p154 = por %p152, %p153
    %p155 = scmp.le.s32.totalorder 1, %s11
    %p156 = scmp.lt.s32.totalorder %s11, 3
    %p157 = pnand %p155, %p156
    %p158 = pneg %p157
    // Predicated region
    $region9: #{decoder_block_forward.3} parent=5 // pred_check
      _
    $region10: #{decoder_block_forward.3} parent=5 // pred_check_branch
      %160 = sbr.rel (%p157) target = $region12
    $region11: #{decoder_block_forward.3} parent=5 // pred_region
      %s161 = ssub.s32 %s11, 1
      // Predicated region
      $region13: #{decoder_block_forward.3} parent=11 // pred_check
        %p162 = pneg %p98
      $region14: #{decoder_block_forward.3} parent=11 // pred_check_branch
        %164 = sbr.rel (%p162) target = $region16
      $region15: #{decoder_block_forward.3} parent=11 // pred_region
        _
      $region16: #{decoder_block_forward.3} parent=11 // pred_fallthru
        _
      // Predicated region
      $region17: #{decoder_block_forward.3} parent=11 // pred_check
        %p165 = pneg %p119
      $region18: #{decoder_block_forward.3} parent=11 // pred_check_branch
        %167 = sbr.rel (%p165) target = $region20
      $region19: #{decoder_block_forward.3} parent=11 // pred_region
        _
      $region20: #{decoder_block_forward.3} parent=11 // pred_fallthru
        _
    $region12: #{decoder_block_forward.3} parent=5 // pred_fallthru
      _
    %p168 = scmp.lt.s32.totalorder %s11, 2
    // Predicated region
    $region21: #{decoder_block_forward.3} parent=5 // pred_check
      %p169 = pneg %p168
    $region22: #{decoder_block_forward.3} parent=5 // pred_check_branch
      %171 = sbr.rel (%p169) target = $region24
    $region23: #{decoder_block_forward.3} parent=5 // pred_region
      // Predicated region
      $region25: #{decoder_block_forward.3} parent=23 // pred_check
        %p172 = pneg %p45
      $region26: #{decoder_block_forward.3} parent=23 // pred_check_branch
        %174 = sbr.rel (%p172) target = $region28
      $region27: #{decoder_block_forward.3} parent=23 // pred_region
        %p175 = scmp.lt.s32.totalorder %s18, 1
        %s176 = scalar_select %p175, %s18, 1
        %p177 = scmp.lt.s32.totalorder %s19, 0
        %s178 = scalar_select %p177, %s19, 0
        %s179 = smul.addr %s176, 4
        %s180 = sadd.s32 %s178, %s179
        %s181 = smul.addr %s180, 8
        %s182 = scalar_lea.vmem %s0, %s181
      $region28: #{decoder_block_forward.3} parent=23 // pred_fallthru
        _
      // Predicated region
      $region29: #{decoder_block_forward.3} parent=23 // pred_check
        %p183 = pneg %p71
      $region30: #{decoder_block_forward.3} parent=23 // pred_check_branch
        %185 = sbr.rel (%p183) target = $region32
      $region31: #{decoder_block_forward.3} parent=23 // pred_region
        %p186 = scmp.lt.s32.totalorder %s18, 1
        %s187 = scalar_select %p186, %s18, 1
        %s188 = smul.addr %s187, 4
        %s189 = smul.addr %s188, 8
        %s190 = scalar_lea.vmem %s1, %s189
      $region32: #{decoder_block_forward.3} parent=23 // pred_fallthru
        _
    $region24: #{decoder_block_forward.3} parent=5 // pred_fallthru
      _
    %p191 = scmp.le.s32.totalorder 1, %s11
    %p192 = scmp.lt.s32.totalorder %s11, 3
    %p193 = pnand %p191, %p192
    %p194 = pneg %p193
    // Predicated region
    $region33: #{decoder_block_forward.3} parent=5 // pred_check
      _
    $region34: #{decoder_block_forward.3} parent=5 // pred_check_branch
      %196 = sbr.rel (%p193) target = $region36
    $region35: #{decoder_block_forward.3} parent=5 // pred_region
      %s197 = ssub.s32 %s11, 1
      %p198 = scmp.lt.s32.totalorder %s20, 1
      %s199 = scalar_select %p198, %s20, 1
      %p200 = scmp.lt.s32.totalorder %s21, 0
      %s201 = scalar_select %p200, %s21, 0
      %s202 = smul.addr %s199, 4
      %s203 = sadd.s32 %s201, %s202
      %s204 = smul.addr %s203, 8
      %s205 = scalar_lea.vmem %s0, %s204
      %p206 = pneg %p51
      %p207 = pneg %p48
      %p208 = scmp.lt.s32.totalorder %s20, 1
      %s209 = scalar_select %p208, %s20, 1
      %s210 = smul.addr %s209, 4
      %s211 = smul.addr %s210, 8
      %s212 = scalar_lea.vmem %s1, %s211
      %p213 = pneg %p77
      %p214 = pneg %p74
      %p215 = pneg %p98
      %p216 = pneg %p95
      %p217 = pneg %p119
      %p218 = pneg %p116
      %p219 = pneg %p147
      %p220 = pneg %p144
      %p221 = scmp.lt.s32.totalorder %s20, 1
      %s222 = scalar_select %p221, %s20, 1
      %p223 = scmp.lt.s32.totalorder %s21, 0
      %s224 = scalar_select %p223, %s21, 0
      %s225 = smul.addr %s222, 4
      %s226 = sadd.s32 %s224, %s225
      %s227 = smul.addr %s226, 8
      %s228 = scalar_lea.vmem %s4, %s227
      %p229 = scmp.lt.s32.totalorder %s20, 1
      %s230 = scalar_select %p229, %s20, 1
      %p231 = scmp.lt.s32.totalorder %s21, 0
      %s232 = scalar_select %p231, %s21, 0
      %s233 = smul.addr %s230, 4
      %s234 = sadd.s32 %s232, %s233
      %s235 = smul.addr %s234, 8
      %s236 = scalar_lea.vmem %s0, %s235
      %p237 = scmp.lt.s32.totalorder %s20, 1
      %s238 = scalar_select %p237, %s20, 1
      %s239 = smul.addr %s238, 4
      %s240 = smul.addr %s239, 8
      %s241 = scalar_lea.vmem %s1, %s240
      %p242 = scmp.lt.s32.totalorder %s20, 1
      %s243 = scalar_select %p242, %s20, 1
      %p244 = scmp.lt.s32.totalorder %s21, 0
      %s245 = scalar_select %p244, %s21, 0
      %s246 = smul.addr %s243, 4
      %s247 = sadd.s32 %s245, %s246
      %s248 = smul.addr %s247, 8
      %s249 = scalar_lea.vmem %s4, %s248
      %v250 = vld [vmem:[%s236] sm:$0xff]
      %v251 = vld [vmem:[%s236 + $0x8] sm:$0xff]
      %v252 = vld [vmem:[%s236 + $0x10] sm:$0xff]
      %v253 = vld [vmem:[%s236 + $0x18] sm:$0xff]
      %v254 = vld [vmem:[%s2] sm:$0xff]
      %v255 = vld [vmem:[%s2 + $0x8] sm:$0xff]
      %v256 = vld [vmem:[%s2 + $0x10] sm:$0xff]
      %v257 = vld [vmem:[%s2 + $0x18] sm:$0xff]
      %259 = vset.pattern.permute.xlu0 0
      %260 = vperm.xlu0 %259, %v254
      %v261 = vpop.permute.xlu0 %260
      %264 = vset.pattern.permute.xlu0 0
      %265 = vperm.xlu0 %264, %v255
      %v266 = vpop.permute.xlu0 %265
      %269 = vset.pattern.permute.xlu0 0
      %270 = vperm.xlu0 %269, %v256
      %v271 = vpop.permute.xlu0 %270
      %274 = vset.pattern.permute.xlu0 0
      %275 = vperm.xlu0 %274, %v257
      %v276 = vpop.permute.xlu0 %275
      %v278 = vmul.f32 %v250, %v261
      %v279 = vmul.f32 %v251, %v266
      %v280 = vmul.f32 %v252, %v271
      %v281 = vmul.f32 %v253, %v276
      %vm282 = vcmask 130048
      %v283 = vsel %vm282, %v278, 0.0
      %v284 = vsel %vm282, %v279, 0.0
      %v285 = vadd.f32 %v283, %v284
      %v286 = vsel %vm282, %v280, 0.0
      %v287 = vadd.f32 %v285, %v286
      %v288 = vsel %vm282, %v281, 0.0
      %v289 = vadd.f32 %v287, %v288
      %v290 = vrot.slane %v289, 4
      %v291 = vadd.f32 %v289, %v290
      %v292 = vrot.slane %v291, 2
      %v293 = vadd.f32 %v291, %v292
      %v294 = vrot.slane %v293, 1
      %v295 = vadd.f32 %v293, %v294
      %s296 = sld [smem:[#allocation2]]
      %v297 = vstv %s296
      %v298 = vadd.f32 %v295, %v297
      %v299 = vxor.u32 %v298, 2147483648
      %v300 = vmul.f32 %v299, 1.442695
      %v301 = vpow.pop %v300
      %v302 = vadd.f32 %v301, 1.0
      %v303 = vrcp.pop %v302
      %v304 = vmul.f32 1.0, %v303
      %v305 = vld [vmem:[%s241] sm:$0xff]
      %v306 = vld [vmem:[%s241 + $0x8] sm:$0xff]
      %v307 = vld [vmem:[%s241 + $0x10] sm:$0xff]
      %v308 = vld [vmem:[%s241 + $0x18] sm:$0xff]
      %310 = vset.pattern.permute.xlu0 0
      %311 = vperm.xlu0 %310, %v305
      %v312 = vpop.permute.xlu0 %311
      %315 = vset.pattern.permute.xlu0 0
      %316 = vperm.xlu0 %315, %v306
      %v317 = vpop.permute.xlu0 %316
      %320 = vset.pattern.permute.xlu0 0
      %321 = vperm.xlu0 %320, %v307
      %v322 = vpop.permute.xlu0 %321
      %325 = vset.pattern.permute.xlu0 0
      %326 = vperm.xlu0 %325, %v308
      %v327 = vpop.permute.xlu0 %326
      %v329 = vadd.f32 %v312, %v304
      %v330 = vadd.f32 %v317, %v304
      %v331 = vadd.f32 %v322, %v304
      %v332 = vadd.f32 %v327, %v304
      %v333 = vmul.f32 %v250, %v329
      %v334 = vmul.f32 %v251, %v330
      %v335 = vmul.f32 %v252, %v331
      %v336 = vmul.f32 %v253, %v332
      %337 = vst.msk [vmem:[%s249] sm:$0xff] %vm282, %v333
      %338 = vst.msk [vmem:[%s249 + $0x8] sm:$0xff] %vm282, %v334
      %339 = vst.msk [vmem:[%s249 + $0x10] sm:$0xff] %vm282, %v335
      %340 = vst.msk [vmem:[%s249 + $0x18] sm:$0xff] %vm282, %v336
      %p341 = scmp.lt.s32.totalorder %s20, 1
      %s342 = scalar_select %p341, %s20, 1
      %p343 = scmp.lt.s32.totalorder %s21, 0
      %s344 = scalar_select %p343, %s21, 0
      %s345 = smul.addr %s342, 4
      %s346 = sadd.s32 %s344, %s345
      %s347 = smul.addr %s346, 8
      %s348 = scalar_lea.vmem %s4, %s347
      // Predicated region
      $region37: #{decoder_block_forward.3} parent=35 // pred_check
        %p349 = pneg %p144
      $region38: #{decoder_block_forward.3} parent=35 // pred_check_branch
        %351 = sbr.rel (%p349) target = $region40
      $region39: #{decoder_block_forward.3} parent=35 // pred_region
        _
      $region40: #{decoder_block_forward.3} parent=35 // pred_fallthru
        _
    $region36: #{decoder_block_forward.3} parent=5 // pred_fallthru
      _
    %p352 = scmp.le.s32.totalorder 2, %s11
    // Predicated region
    $region41: #{decoder_block_forward.3} parent=5 // pred_check
      %p353 = pneg %p352
    $region42: #{decoder_block_forward.3} parent=5 // pred_check_branch
      %355 = sbr.rel (%p353) target = $region44
    $region43: #{decoder_block_forward.3} parent=5 // pred_region
      %s356 = ssub.s32 %s11, 2
      // Predicated region
      $region45: #{decoder_block_forward.3} parent=43 // pred_check
        %p357 = pneg %p150
      $region46: #{decoder_block_forward.3} parent=43 // pred_check_branch
        %359 = sbr.rel (%p357) target = $region48
      $region47: #{decoder_block_forward.3} parent=43 // pred_region
        %p360 = scmp.lt.s32.totalorder %s22, 1
        %s361 = scalar_select %p360, %s22, 1
        %p362 = scmp.lt.s32.totalorder %s23, 0
        %s363 = scalar_select %p362, %s23, 0
        %s364 = smul.addr %s361, 4
        %s365 = sadd.s32 %s363, %s364
        %s366 = smul.addr %s365, 8
        %s367 = scalar_lea.vmem %s4, %s366
      $region48: #{decoder_block_forward.3} parent=43 // pred_fallthru
        _
    $region44: #{decoder_block_forward.3} parent=5 // pred_fallthru
      _
  $region6: #{decoder_block_forward.3} parent=0 // loop_footer
    %s15 = sadd.s32 1, %s11
  $region7: #{decoder_block_forward.3} parent=0 // loop_footer_branch
    %10 = sbr.rel target = $region3
  $region8: #{decoder_block_forward.3} parent=0 // loop_exit
    _

// kernel: decoder_block_forward.2
$region0: #{decoder_block_forward.2}
  #allocation0 [shape = 'u32[]', space=smem, size = 0x4, offset = 0x4, fixed_abs, tag = 'smem constant byte address 0x4 - core index']
  #allocation1 [shape = 'u32[144,128]{1,0:T(1,128)}', space=vmem, size = 0x12000, scoped, tag = 'internal scratch']
  #allocation2 [shape = 'f32[1]{0:T(128)S(6)}', space=smem, size = 0x200, scoped, tag = 'scoped memory for decoder_block_forward.2']
  %s0 = inlined_call_operand.vmem [shape: bf16[2,16,16], index: 0, kind: input, shape index: {}, may-alias: {0,1,2}]
  %s1 = inlined_call_operand.vmem [shape: bf16[2,16,16], index: 1, kind: input, shape index: {}, may-alias: {0,1,2}]
  %s2 = inlined_call_operand.vmem [shape: bf16[2,16,16], index: 2, kind: input, shape index: {}, may-alias: {0,1,2}]
  %s3 = inlined_call_operand.vmem [shape: bf16[2,16,16], index: 3, kind: input, shape index: {}, may-alias: {3,4,5}]
  %s4 = inlined_call_operand.vmem [shape: bf16[2,16,16], index: 4, kind: input, shape index: {}, may-alias: {3,4,5}]
  %s5 = inlined_call_operand.vmem [shape: bf16[2,16,16], index: 5, kind: input, shape index: {}, may-alias: {3,4,5}]
  %s6 = inlined_call_operand.vmem [shape: f32[2,32,1], index: 6, kind: input, shape index: {}]
  %s7 = inlined_call_operand.vmem [shape: f32[32,1], index: 7, kind: input, shape index: {}]
  %s8 = inlined_call_operand.<no memory space> [shape: f32[1], index: 8, kind: input, shape index: {}]
  %s9 = inlined_call_operand.vmem [shape: bf16[96,32], index: 9, kind: input, shape index: {}]
  %s10 = inlined_call_operand.vmem [shape: f32[32,1], index: 10, kind: input, shape index: {}]
  %s11 = inlined_call_operand.vmem [shape: f32[32,1], index: 11, kind: input, shape index: {}]
  %s12 = inlined_call_operand.vmem [shape: bf16[96,32], index: 12, kind: input, shape index: {}]
  %s13 = inlined_call_operand.vmem [shape: f32[32,1], index: 13, kind: input, shape index: {}]
  %s14 = inlined_call_operand.vmem [shape: f32[32,1], index: 14, kind: input, shape index: {}]
  %s15 = inlined_call_operand.vmem [shape: f32[2,32,16], index: 15, kind: output, shape index: {}]
  %s16 = sld [smem:[#allocation0]]
  $region93: #{decoder_block_forward.2} parent=0
    _
  %s18 = ssub.s32 1, %s16
  %s19 = scalar_select 0, %s18, %s16
  %20 = sst [smem:[#allocation2]] %s8
  loop: start=0, step=1, limit=4
  $region2: #{decoder_block_forward.2} parent=0 // loop_pre_header
    _
  $region3: #{decoder_block_forward.2} parent=0 // loop_header
    %s22 = sphi 0, %s26
    %p23 = scmp.ge.s32.totalorder %s22, 4
    %s29 = sphi 0, %s41
    %s30 = sphi 0, %s37
    %s31 = sphi 0, %s29
    %s32 = sphi 0, %s30
    %s33 = sphi 0, %s31
    %s34 = sphi 0, %s32
    %s52 = sphi 0, %s54
    %s55 = sphi 0, %s52
    %s56 = sphi 0, %s55
    %s72 = sphi 0, %s56
    %s80 = sphi 0, %s82
    %s83 = sphi 0, %s80
    %s84 = sphi 0, %s83
    %s100 = sphi 0, %s84
    %s114 = sphi 0, %s116
    %s117 = sphi 0, %s114
    %s118 = sphi 0, %s117
    %s134 = sphi 0, %s118
    %s148 = sphi 0, %s150
    %s151 = sphi 0, %s148
    %s152 = sphi 0, %s151
    %s168 = sphi 0, %s152
    %s176 = sphi 0, %s178
    %s179 = sphi 0, %s176
    %s180 = sphi 0, %s179
    %s196 = sphi 0, %s180
    %s210 = sphi 0, %s212
    %s213 = sphi 0, %s210
    %s214 = sphi 0, %s213
    %s230 = sphi 0, %s214
    %s236 = sphi 0, %s238
    %s239 = sphi 0, %s236
    %s240 = sphi 0, %s239
    %s256 = sphi 0, %s240
    %s260 = sphi 0, %s260
    %s262 = sphi 0, %s260
    %s263 = sphi 0, %s262
    %s277 = sphi 0, %s263
    %s281 = sphi 0, %s281
    %s283 = sphi 0, %s281
    %s284 = sphi 0, %s283
    %s298 = sphi 0, %s284
    %s302 = sphi 0, %s302
    %s304 = sphi 0, %s302
    %s305 = sphi 0, %s304
    %s319 = sphi 0, %s305
    %s323 = sphi 0, %s323
    %s325 = sphi 0, %s323
    %s326 = sphi 0, %s325
    %s340 = sphi 0, %s326
    %s344 = sphi 0, %s344
    %s346 = sphi 0, %s344
    %s347 = sphi 0, %s346
    %s361 = sphi 0, %s347
    %s365 = sphi 0, %s365
    %s367 = sphi 0, %s365
    %s368 = sphi 0, %s367
    %s382 = sphi 0, %s368
    %s386 = sphi 0, %s386
    %s388 = sphi 0, %s386
    %s389 = sphi 0, %s388
    %s403 = sphi 0, %s389
    %s407 = sphi 0, %s407
    %s409 = sphi 0, %s407
    %s410 = sphi 0, %s409
    %s424 = sphi 0, %s410
    %s432 = sphi 0, %s434
    %s435 = sphi 0, %s432
    %s436 = sphi 0, %s435
    %s452 = sphi 0, %s436
  $region4: #{decoder_block_forward.2} parent=0 // loop_header_branch
    %25 = sbr.rel (%p23) target = $region8
  $region5: #{decoder_block_forward.2} parent=0 // loop_body
    %s27 = ssub.s32 %s22, 1
    %s28 = ssub.s32 %s22, 2
    %s35 = sadd.s32 1, %s30
    %p36 = scmp.ge.s32.totalorder %s35, 1
    %s37 = scalar_select %p36, 0, %s35
    %s38 = sadd.s32 1, %s29
    %s39 = scalar_select %p36, %s38, %s29
    %p40 = scmp.ge.s32.totalorder %s39, 2
    %s41 = scalar_select %p40, 0, %s39
    %s42 = ssub.s32 %s30, 1
    %p43 = scmp.gt.s32.totalorder %s42, 0
    %s44 = scalar_select %p43, %s42, 0
    %s45 = ssub.s32 %s37, 1
    %p46 = scmp.gt.s32.totalorder %s45, 0
    %s47 = scalar_select %p46, %s45, 0
    %s48 = ssub.s32 %s29, %s41
    %s49 = ssub.s32 %s44, %s47
    %s50 = sor.u32 %s48, %s49
    %p51 = scmp.eq.s32.totalorder %s50, 0
    %s53 = sadd.s32 %s52, 1
    %s54 = scalar_select %p51, %s52, %s53
    %p57 = pneg %p51
    %p58 = scmp.eq.s32.totalorder %s22, 1
    %p59 = por %p57, %p58
    %p60 = scmp.ne.s32.totalorder %s52, %s55
    %p61 = scmp.eq.s32.totalorder %s22, 0
    %p62 = por %p60, %p61
    %p63 = scmp.ne.s32.totalorder %s52, %s55
    %p64 = scmp.eq.s32.totalorder %s27, 1
    %p65 = por %p63, %p64
    %p66 = scmp.ne.s32.totalorder %s55, %s56
    %p67 = scmp.eq.s32.totalorder %s27, 0
    %p68 = por %p66, %p67
    %p69 = scmp.ne.s32.totalorder %s55, %s56
    %p70 = scmp.eq.s32.totalorder %s28, 1
    %p71 = por %p69, %p70
    %p73 = scmp.ne.s32.totalorder %s56, %s72
    %p74 = scmp.eq.s32.totalorder %s28, 0
    %p75 = por %p73, %p74
    %s76 = ssub.s32 %s29, %s41
    %s77 = ssub.s32 %s30, %s37
    %s78 = sor.u32 %s76, %s77
    %p79 = scmp.eq.s32.totalorder %s78, 0
    %s81 = sadd.s32 %s80, 1
    %s82 = scalar_select %p79, %s80, %s81
    %p85 = pneg %p79
    %p86 = scmp.eq.s32.totalorder %s22, 1
    %p87 = por %p85, %p86
    %p88 = scmp.ne.s32.totalorder %s80, %s83
    %p89 = scmp.eq.s32.totalorder %s22, 0
    %p90 = por %p88, %p89
    %p91 = scmp.ne.s32.totalorder %s80, %s83
    %p92 = scmp.eq.s32.totalorder %s27, 1
    %p93 = por %p91, %p92
    %p94 = scmp.ne.s32.totalorder %s83, %s84
    %p95 = scmp.eq.s32.totalorder %s27, 0
    %p96 = por %p94, %p95
    %p97 = scmp.ne.s32.totalorder %s83, %s84
    %p98 = scmp.eq.s32.totalorder %s28, 1
    %p99 = por %p97, %p98
    %p101 = scmp.ne.s32.totalorder %s84, %s100
    %p102 = scmp.eq.s32.totalorder %s28, 0
    %p103 = por %p101, %p102
    %s104 = sadd.s32 %s30, 1
    %p105 = scmp.lt.s32.totalorder %s104, 0
    %s106 = scalar_select %p105, %s104, 0
    %s107 = sadd.s32 %s37, 1
    %p108 = scmp.lt.s32.totalorder %s107, 0
    %s109 = scalar_select %p108, %s107, 0
    %s110 = ssub.s32 %s29, %s41
    %s111 = ssub.s32 %s106, %s109
    %s112 = sor.u32 %s110, %s111
    %p113 = scmp.eq.s32.totalorder %s112, 0
    %s115 = sadd.s32 %s114, 1
    %s116 = scalar_select %p113, %s114, %s115
    %p119 = pneg %p113
    %p120 = scmp.eq.s32.totalorder %s22, 1
    %p121 = por %p119, %p120
    %p122 = scmp.ne.s32.totalorder %s114, %s117
    %p123 = scmp.eq.s32.totalorder %s22, 0
    %p124 = por %p122, %p123
    %p125 = scmp.ne.s32.totalorder %s114, %s117
    %p126 = scmp.eq.s32.totalorder %s27, 1
    %p127 = por %p125, %p126
    %p128 = scmp.ne.s32.totalorder %s117, %s118
    %p129 = scmp.eq.s32.totalorder %s27, 0
    %p130 = por %p128, %p129
    %p131 = scmp.ne.s32.totalorder %s117, %s118
    %p132 = scmp.eq.s32.totalorder %s28, 1
    %p133 = por %p131, %p132
    %p135 = scmp.ne.s32.totalorder %s118, %s134
    %p136 = scmp.eq.s32.totalorder %s28, 0
    %p137 = por %p135, %p136
    %s138 = ssub.s32 %s30, 1
    %p139 = scmp.gt.s32.totalorder %s138, 0
    %s140 = scalar_select %p139, %s138, 0
    %s141 = ssub.s32 %s37, 1
    %p142 = scmp.gt.s32.totalorder %s141, 0
    %s143 = scalar_select %p142, %s141, 0
    %s144 = ssub.s32 %s29, %s41
    %s145 = ssub.s32 %s140, %s143
    %s146 = sor.u32 %s144, %s145
    %p147 = scmp.eq.s32.totalorder %s146, 0
    %s149 = sadd.s32 %s148, 1
    %s150 = scalar_select %p147, %s148, %s149
    %p153 = pneg %p147
    %p154 = scmp.eq.s32.totalorder %s22, 1
    %p155 = por %p153, %p154
    %p156 = scmp.ne.s32.totalorder %s148, %s151
    %p157 = scmp.eq.s32.totalorder %s22, 0
    %p158 = por %p156, %p157
    %p159 = scmp.ne.s32.totalorder %s148, %s151
    %p160 = scmp.eq.s32.totalorder %s27, 1
    %p161 = por %p159, %p160
    %p162 = scmp.ne.s32.totalorder %s151, %s152
    %p163 = scmp.eq.s32.totalorder %s27, 0
    %p164 = por %p162, %p163
    %p165 = scmp.ne.s32.totalorder %s151, %s152
    %p166 = scmp.eq.s32.totalorder %s28, 1
    %p167 = por %p165, %p166
    %p169 = scmp.ne.s32.totalorder %s152, %s168
    %p170 = scmp.eq.s32.totalorder %s28, 0
    %p171 = por %p169, %p170
    %s172 = ssub.s32 %s29, %s41
    %s173 = ssub.s32 %s30, %s37
    %s174 = sor.u32 %s172, %s173
    %p175 = scmp.eq.s32.totalorder %s174, 0
    %s177 = sadd.s32 %s176, 1
    %s178 = scalar_select %p175, %s176, %s177
    %p181 = pneg %p175
    %p182 = scmp.eq.s32.totalorder %s22, 1
    %p183 = por %p181, %p182
    %p184 = scmp.ne.s32.totalorder %s176, %s179
    %p185 = scmp.eq.s32.totalorder %s22, 0
    %p186 = por %p184, %p185
    %p187 = scmp.ne.s32.totalorder %s176, %s179
    %p188 = scmp.eq.s32.totalorder %s27, 1
    %p189 = por %p187, %p188
    %p190 = scmp.ne.s32.totalorder %s179, %s180
    %p191 = scmp.eq.s32.totalorder %s27, 0
    %p192 = por %p190, %p191
    %p193 = scmp.ne.s32.totalorder %s179, %s180
    %p194 = scmp.eq.s32.totalorder %s28, 1
    %p195 = por %p193, %p194
    %p197 = scmp.ne.s32.totalorder %s180, %s196
    %p198 = scmp.eq.s32.totalorder %s28, 0
    %p199 = por %p197, %p198
    %s200 = sadd.s32 %s30, 1
    %p201 = scmp.lt.s32.totalorder %s200, 0
    %s202 = scalar_select %p201, %s200, 0
    %s203 = sadd.s32 %s37, 1
    %p204 = scmp.lt.s32.totalorder %s203, 0
    %s205 = scalar_select %p204, %s203, 0
    %s206 = ssub.s32 %s29, %s41
    %s207 = ssub.s32 %s202, %s205
    %s208 = sor.u32 %s206, %s207
    %p209 = scmp.eq.s32.totalorder %s208, 0
    %s211 = sadd.s32 %s210, 1
    %s212 = scalar_select %p209, %s210, %s211
    %p215 = pneg %p209
    %p216 = scmp.eq.s32.totalorder %s22, 1
    %p217 = por %p215, %p216
    %p218 = scmp.ne.s32.totalorder %s210, %s213
    %p219 = scmp.eq.s32.totalorder %s22, 0
    %p220 = por %p218, %p219
    %p221 = scmp.ne.s32.totalorder %s210, %s213
    %p222 = scmp.eq.s32.totalorder %s27, 1
    %p223 = por %p221, %p222
    %p224 = scmp.ne.s32.totalorder %s213, %s214
    %p225 = scmp.eq.s32.totalorder %s27, 0
    %p226 = por %p224, %p225
    %p227 = scmp.ne.s32.totalorder %s213, %s214
    %p228 = scmp.eq.s32.totalorder %s28, 1
    %p229 = por %p227, %p228
    %p231 = scmp.ne.s32.totalorder %s214, %s230
    %p232 = scmp.eq.s32.totalorder %s28, 0
    %p233 = por %p231, %p232
    %s234 = ssub.s32 %s29, %s41
    %p235 = scmp.eq.s32.totalorder %s234, 0
    %s237 = sadd.s32 %s236, 1
    %s238 = scalar_select %p235, %s236, %s237
    %p241 = pneg %p235
    %p242 = scmp.eq.s32.totalorder %s22, 1
    %p243 = por %p241, %p242
    %p244 = scmp.ne.s32.totalorder %s236, %s239
    %p245 = scmp.eq.s32.totalorder %s22, 0
    %p246 = por %p244, %p245
    %p247 = scmp.ne.s32.totalorder %s236, %s239
    %p248 = scmp.eq.s32.totalorder %s27, 1
    %p249 = por %p247, %p248
    %p250 = scmp.ne.s32.totalorder %s239, %s240
    %p251 = scmp.eq.s32.totalorder %s27, 0
    %p252 = por %p250, %p251
    %p253 = scmp.ne.s32.totalorder %s239, %s240
    %p254 = scmp.eq.s32.totalorder %s28, 1
    %p255 = por %p253, %p254
    %p257 = scmp.ne.s32.totalorder %s240, %s256
    %p258 = scmp.eq.s32.totalorder %s28, 0
    %p259 = por %p257, %p258
    %s261 = sadd.s32 %s260, 1
    %p264 = scmp.eq.s32.totalorder %s22, 1
    %p265 = scmp.ne.s32.totalorder %s260, %s262
    %p266 = scmp.eq.s32.totalorder %s22, 0
    %p267 = por %p265, %p266
    %p268 = scmp.ne.s32.totalorder %s260, %s262
    %p269 = scmp.eq.s32.totalorder %s27, 1
    %p270 = por %p268, %p269
    %p271 = scmp.ne.s32.totalorder %s262, %s263
    %p272 = scmp.eq.s32.totalorder %s27, 0
    %p273 = por %p271, %p272
    %p274 = scmp.ne.s32.totalorder %s262, %s263
    %p275 = scmp.eq.s32.totalorder %s28, 1
    %p276 = por %p274, %p275
    %p278 = scmp.ne.s32.totalorder %s263, %s277
    %p279 = scmp.eq.s32.totalorder %s28, 0
    %p280 = por %p278, %p279
    %s282 = sadd.s32 %s281, 1
    %p285 = scmp.eq.s32.totalorder %s22, 1
    %p286 = scmp.ne.s32.totalorder %s281, %s283
    %p287 = scmp.eq.s32.totalorder %s22, 0
    %p288 = por %p286, %p287
    %p289 = scmp.ne.s32.totalorder %s281, %s283
    %p290 = scmp.eq.s32.totalorder %s27, 1
    %p291 = por %p289, %p290
    %p292 = scmp.ne.s32.totalorder %s283, %s284
    %p293 = scmp.eq.s32.totalorder %s27, 0
    %p294 = por %p292, %p293
    %p295 = scmp.ne.s32.totalorder %s283, %s284
    %p296 = scmp.eq.s32.totalorder %s28, 1
    %p297 = por %p295, %p296
    %p299 = scmp.ne.s32.totalorder %s284, %s298
    %p300 = scmp.eq.s32.totalorder %s28, 0
    %p301 = por %p299, %p300
    %s303 = sadd.s32 %s302, 1
    %p306 = scmp.eq.s32.totalorder %s22, 1
    %p307 = scmp.ne.s32.totalorder %s302, %s304
    %p308 = scmp.eq.s32.totalorder %s22, 0
    %p309 = por %p307, %p308
    %p310 = scmp.ne.s32.totalorder %s302, %s304
    %p311 = scmp.eq.s32.totalorder %s27, 1
    %p312 = por %p310, %p311
    %p313 = scmp.ne.s32.totalorder %s304, %s305
    %p314 = scmp.eq.s32.totalorder %s27, 0
    %p315 = por %p313, %p314
    %p316 = scmp.ne.s32.totalorder %s304, %s305
    %p317 = scmp.eq.s32.totalorder %s28, 1
    %p318 = por %p316, %p317
    %p320 = scmp.ne.s32.totalorder %s305, %s319
    %p321 = scmp.eq.s32.totalorder %s28, 0
    %p322 = por %p320, %p321
    %s324 = sadd.s32 %s323, 1
    %p327 = scmp.eq.s32.totalorder %s22, 1
    %p328 = scmp.ne.s32.totalorder %s323, %s325
    %p329 = scmp.eq.s32.totalorder %s22, 0
    %p330 = por %p328, %p329
    %p331 = scmp.ne.s32.totalorder %s323, %s325
    %p332 = scmp.eq.s32.totalorder %s27, 1
    %p333 = por %p331, %p332
    %p334 = scmp.ne.s32.totalorder %s325, %s326
    %p335 = scmp.eq.s32.totalorder %s27, 0
    %p336 = por %p334, %p335
    %p337 = scmp.ne.s32.totalorder %s325, %s326
    %p338 = scmp.eq.s32.totalorder %s28, 1
    %p339 = por %p337, %p338
    %p341 = scmp.ne.s32.totalorder %s326, %s340
    %p342 = scmp.eq.s32.totalorder %s28, 0
    %p343 = por %p341, %p342
    %s345 = sadd.s32 %s344, 1
    %p348 = scmp.eq.s32.totalorder %s22, 1
    %p349 = scmp.ne.s32.totalorder %s344, %s346
    %p350 = scmp.eq.s32.totalorder %s22, 0
    %p351 = por %p349, %p350
    %p352 = scmp.ne.s32.totalorder %s344, %s346
    %p353 = scmp.eq.s32.totalorder %s27, 1
    %p354 = por %p352, %p353
    %p355 = scmp.ne.s32.totalorder %s346, %s347
    %p356 = scmp.eq.s32.totalorder %s27, 0
    %p357 = por %p355, %p356
    %p358 = scmp.ne.s32.totalorder %s346, %s347
    %p359 = scmp.eq.s32.totalorder %s28, 1
    %p360 = por %p358, %p359
    %p362 = scmp.ne.s32.totalorder %s347, %s361
    %p363 = scmp.eq.s32.totalorder %s28, 0
    %p364 = por %p362, %p363
    %s366 = sadd.s32 %s365, 1
    %p369 = scmp.eq.s32.totalorder %s22, 1
    %p370 = scmp.ne.s32.totalorder %s365, %s367
    %p371 = scmp.eq.s32.totalorder %s22, 0
    %p372 = por %p370, %p371
    %p373 = scmp.ne.s32.totalorder %s365, %s367
    %p374 = scmp.eq.s32.totalorder %s27, 1
    %p375 = por %p373, %p374
    %p376 = scmp.ne.s32.totalorder %s367, %s368
    %p377 = scmp.eq.s32.totalorder %s27, 0
    %p378 = por %p376, %p377
    %p379 = scmp.ne.s32.totalorder %s367, %s368
    %p380 = scmp.eq.s32.totalorder %s28, 1
    %p381 = por %p379, %p380
    %p383 = scmp.ne.s32.totalorder %s368, %s382
    %p384 = scmp.eq.s32.totalorder %s28, 0
    %p385 = por %p383, %p384
    %s387 = sadd.s32 %s386, 1
    %p390 = scmp.eq.s32.totalorder %s22, 1
    %p391 = scmp.ne.s32.totalorder %s386, %s388
    %p392 = scmp.eq.s32.totalorder %s22, 0
    %p393 = por %p391, %p392
    %p394 = scmp.ne.s32.totalorder %s386, %s388
    %p395 = scmp.eq.s32.totalorder %s27, 1
    %p396 = por %p394, %p395
    %p397 = scmp.ne.s32.totalorder %s388, %s389
    %p398 = scmp.eq.s32.totalorder %s27, 0
    %p399 = por %p397, %p398
    %p400 = scmp.ne.s32.totalorder %s388, %s389
    %p401 = scmp.eq.s32.totalorder %s28, 1
    %p402 = por %p400, %p401
    %p404 = scmp.ne.s32.totalorder %s389, %s403
    %p405 = scmp.eq.s32.totalorder %s28, 0
    %p406 = por %p404, %p405
    %s408 = sadd.s32 %s407, 1
    %p411 = scmp.eq.s32.totalorder %s22, 1
    %p412 = scmp.ne.s32.totalorder %s407, %s409
    %p413 = scmp.eq.s32.totalorder %s22, 0
    %p414 = por %p412, %p413
    %p415 = scmp.ne.s32.totalorder %s407, %s409
    %p416 = scmp.eq.s32.totalorder %s27, 1
    %p417 = por %p415, %p416
    %p418 = scmp.ne.s32.totalorder %s409, %s410
    %p419 = scmp.eq.s32.totalorder %s27, 0
    %p420 = por %p418, %p419
    %p421 = scmp.ne.s32.totalorder %s409, %s410
    %p422 = scmp.eq.s32.totalorder %s28, 1
    %p423 = por %p421, %p422
    %p425 = scmp.ne.s32.totalorder %s410, %s424
    %p426 = scmp.eq.s32.totalorder %s28, 0
    %p427 = por %p425, %p426
    %s428 = ssub.s32 %s29, %s41
    %s429 = ssub.s32 %s30, %s37
    %s430 = sor.u32 %s428, %s429
    %p431 = scmp.eq.s32.totalorder %s430, 0
    %s433 = sadd.s32 %s432, 1
    %s434 = scalar_select %p431, %s432, %s433
    %p437 = pneg %p431
    %p438 = scmp.eq.s32.totalorder %s22, 1
    %p439 = por %p437, %p438
    %p440 = scmp.ne.s32.totalorder %s432, %s435
    %p441 = scmp.eq.s32.totalorder %s22, 0
    %p442 = por %p440, %p441
    %p443 = scmp.ne.s32.totalorder %s432, %s435
    %p444 = scmp.eq.s32.totalorder %s27, 1
    %p445 = por %p443, %p444
    %p446 = scmp.ne.s32.totalorder %s435, %s436
    %p447 = scmp.eq.s32.totalorder %s27, 0
    %p448 = por %p446, %p447
    %p449 = scmp.ne.s32.totalorder %s435, %s436
    %p450 = scmp.eq.s32.totalorder %s28, 1
    %p451 = por %p449, %p450
    %p453 = scmp.ne.s32.totalorder %s436, %s452
    %p454 = scmp.eq.s32.totalorder %s28, 0
    %p455 = por %p453, %p454
    %p456 = scmp.le.s32.totalorder 1, %s22
    %p457 = scmp.lt.s32.totalorder %s22, 3
    %p458 = pnand %p456, %p457
    %p459 = pneg %p458
    // Predicated region
    $region9: #{decoder_block_forward.2} parent=5 // pred_check
      _
    $region10: #{decoder_block_forward.2} parent=5 // pred_check_branch
      %461 = sbr.rel (%p458) target = $region12
    $region11: #{decoder_block_forward.2} parent=5 // pred_region
      %s462 = ssub.s32 %s22, 1
      // Predicated region
      $region13: #{decoder_block_forward.2} parent=11 // pred_check
        %p463 = pneg %p273
      $region14: #{decoder_block_forward.2} parent=11 // pred_check_branch
        %465 = sbr.rel (%p463) target = $region16
      $region15: #{decoder_block_forward.2} parent=11 // pred_region
        _
      $region16: #{decoder_block_forward.2} parent=11 // pred_fallthru
        _
      // Predicated region
      $region17: #{decoder_block_forward.2} parent=11 // pred_check
        %p466 = pneg %p294
      $region18: #{decoder_block_forward.2} parent=11 // pred_check_branch
        %468 = sbr.rel (%p466) target = $region20
      $region19: #{decoder_block_forward.2} parent=11 // pred_region
        _
      $region20: #{decoder_block_forward.2} parent=11 // pred_fallthru
        _
      // Predicated region
      $region21: #{decoder_block_forward.2} parent=11 // pred_check
        %p469 = pneg %p315
      $region22: #{decoder_block_forward.2} parent=11 // pred_check_branch
        %471 = sbr.rel (%p469) target = $region24
      $region23: #{decoder_block_forward.2} parent=11 // pred_region
        _
      $region24: #{decoder_block_forward.2} parent=11 // pred_fallthru
        _
      // Predicated region
      $region25: #{decoder_block_forward.2} parent=11 // pred_check
        %p472 = pneg %p336
      $region26: #{decoder_block_forward.2} parent=11 // pred_check_branch
        %474 = sbr.rel (%p472) target = $region28
      $region27: #{decoder_block_forward.2} parent=11 // pred_region
        _
      $region28: #{decoder_block_forward.2} parent=11 // pred_fallthru
        _
      // Predicated region
      $region29: #{decoder_block_forward.2} parent=11 // pred_check
        %p475 = pneg %p357
      $region30: #{decoder_block_forward.2} parent=11 // pred_check_branch
        %477 = sbr.rel (%p475) target = $region32
      $region31: #{decoder_block_forward.2} parent=11 // pred_region
        _
      $region32: #{decoder_block_forward.2} parent=11 // pred_fallthru
        _
      // Predicated region
      $region33: #{decoder_block_forward.2} parent=11 // pred_check
        %p478 = pneg %p378
      $region34: #{decoder_block_forward.2} parent=11 // pred_check_branch
        %480 = sbr.rel (%p478) target = $region36
      $region35: #{decoder_block_forward.2} parent=11 // pred_region
        _
      $region36: #{decoder_block_forward.2} parent=11 // pred_fallthru
        _
      // Predicated region
      $region37: #{decoder_block_forward.2} parent=11 // pred_check
        %p481 = pneg %p399
      $region38: #{decoder_block_forward.2} parent=11 // pred_check_branch
        %483 = sbr.rel (%p481) target = $region40
      $region39: #{decoder_block_forward.2} parent=11 // pred_region
        _
      $region40: #{decoder_block_forward.2} parent=11 // pred_fallthru
        _
      // Predicated region
      $region41: #{decoder_block_forward.2} parent=11 // pred_check
        %p484 = pneg %p420
      $region42: #{decoder_block_forward.2} parent=11 // pred_check_branch
        %486 = sbr.rel (%p484) target = $region44
      $region43: #{decoder_block_forward.2} parent=11 // pred_region
        _
      $region44: #{decoder_block_forward.2} parent=11 // pred_fallthru
        _
    $region12: #{decoder_block_forward.2} parent=5 // pred_fallthru
      _
    %p487 = scmp.lt.s32.totalorder %s22, 2
    // Predicated region
    $region45: #{decoder_block_forward.2} parent=5 // pred_check
      %p488 = pneg %p487
    $region46: #{decoder_block_forward.2} parent=5 // pred_check_branch
      %490 = sbr.rel (%p488) target = $region48
    $region47: #{decoder_block_forward.2} parent=5 // pred_region
      // Predicated region
      $region49: #{decoder_block_forward.2} parent=47 // pred_check
        %p491 = pneg %p62
      $region50: #{decoder_block_forward.2} parent=47 // pred_check_branch
        %493 = sbr.rel (%p491) target = $region52
      $region51: #{decoder_block_forward.2} parent=47 // pred_region
        %s494 = ssub.s32 %s30, 1
        %p495 = scmp.gt.s32.totalorder %s494, 0
        %s496 = scalar_select %p495, %s494, 0
        %p497 = scmp.lt.s32.totalorder %s29, 1
        %s498 = scalar_select %p497, %s29, 1
        %p499 = scmp.lt.s32.totalorder %s496, 0
        %s500 = scalar_select %p499, %s496, 0
        %s501 = smul.addr %s498, 2
        %s502 = sadd.s32 %s500, %s501
        %s503 = smul.addr %s502, 4
        %s504 = scalar_lea.vmem %s0, %s503
        %s505 = ssub.s32 %s30, 1
        %p506 = scmp.gt.s32.totalorder %s505, 0
        %s507 = scalar_select %p506, %s505, 0
      $region52: #{decoder_block_forward.2} parent=47 // pred_fallthru
        _
      // Predicated region
      $region53: #{decoder_block_forward.2} parent=47 // pred_check
        %p508 = pneg %p90
      $region54: #{decoder_block_forward.2} parent=47 // pred_check_branch
        %510 = sbr.rel (%p508) target = $region56
      $region55: #{decoder_block_forward.2} parent=47 // pred_region
        %p511 = scmp.lt.s32.totalorder %s29, 1
        %s512 = scalar_select %p511, %s29, 1
        %p513 = scmp.lt.s32.totalorder %s30, 0
        %s514 = scalar_select %p513, %s30, 0
        %s515 = smul.addr %s512, 2
        %s516 = sadd.s32 %s514, %s515
        %s517 = smul.addr %s516, 4
        %s518 = scalar_lea.vmem %s1, %s517
      $region56: #{decoder_block_forward.2} parent=47 // pred_fallthru
        _
      // Predicated region
      $region57: #{decoder_block_forward.2} parent=47 // pred_check
        %p519 = pneg %p124
      $region58: #{decoder_block_forward.2} parent=47 // pred_check_branch
        %521 = sbr.rel (%p519) target = $region60
      $region59: #{decoder_block_forward.2} parent=47 // pred_region
        %s522 = sadd.s32 %s30, 1
        %p523 = scmp.lt.s32.totalorder %s522, 0
        %s524 = scalar_select %p523, %s522, 0
        %p525 = scmp.lt.s32.totalorder %s29, 1
        %s526 = scalar_select %p525, %s29, 1
        %p527 = scmp.lt.s32.totalorder %s524, 0
        %s528 = scalar_select %p527, %s524, 0
        %s529 = smul.addr %s526, 2
        %s530 = sadd.s32 %s528, %s529
        %s531 = smul.addr %s530, 4
        %s532 = scalar_lea.vmem %s2, %s531
        %s533 = sadd.s32 %s30, 1
        %p534 = scmp.lt.s32.totalorder %s533, 0
        %s535 = scalar_select %p534, %s533, 0
      $region60: #{decoder_block_forward.2} parent=47 // pred_fallthru
        _
      // Predicated region
      $region61: #{decoder_block_forward.2} parent=47 // pred_check
        %p536 = pneg %p158
      $region62: #{decoder_block_forward.2} parent=47 // pred_check_branch
        %538 = sbr.rel (%p536) target = $region64
      $region63: #{decoder_block_forward.2} parent=47 // pred_region
        %s539 = ssub.s32 %s30, 1
        %p540 = scmp.gt.s32.totalorder %s539, 0
        %s541 = scalar_select %p540, %s539, 0
        %p542 = scmp.lt.s32.totalorder %s29, 1
        %s543 = scalar_select %p542, %s29, 1
        %p544 = scmp.lt.s32.totalorder %s541, 0
        %s545 = scalar_select %p544, %s541, 0
        %s546 = smul.addr %s543, 2
        %s547 = sadd.s32 %s545, %s546
        %s548 = smul.addr %s547, 4
        %s549 = scalar_lea.vmem %s3, %s548
        %s550 = ssub.s32 %s30, 1
        %p551 = scmp.gt.s32.totalorder %s550, 0
        %s552 = scalar_select %p551, %s550, 0
      $region64: #{decoder_block_forward.2} parent=47 // pred_fallthru
        _
      // Predicated region
      $region65: #{decoder_block_forward.2} parent=47 // pred_check
        %p553 = pneg %p186
      $region66: #{decoder_block_forward.2} parent=47 // pred_check_branch
        %555 = sbr.rel (%p553) target = $region68
      $region67: #{decoder_block_forward.2} parent=47 // pred_region
        %p556 = scmp.lt.s32.totalorder %s29, 1
        %s557 = scalar_select %p556, %s29, 1
        %p558 = scmp.lt.s32.totalorder %s30, 0
        %s559 = scalar_select %p558, %s30, 0
        %s560 = smul.addr %s557, 2
        %s561 = sadd.s32 %s559, %s560
        %s562 = smul.addr %s561, 4
        %s563 = scalar_lea.vmem %s4, %s562
      $region68: #{decoder_block_forward.2} parent=47 // pred_fallthru
        _
      // Predicated region
      $region69: #{decoder_block_forward.2} parent=47 // pred_check
        %p564 = pneg %p220
      $region70: #{decoder_block_forward.2} parent=47 // pred_check_branch
        %566 = sbr.rel (%p564) target = $region72
      $region71: #{decoder_block_forward.2} parent=47 // pred_region
        %s567 = sadd.s32 %s30, 1
        %p568 = scmp.lt.s32.totalorder %s567, 0
        %s569 = scalar_select %p568, %s567, 0
        %p570 = scmp.lt.s32.totalorder %s29, 1
        %s571 = scalar_select %p570, %s29, 1
        %p572 = scmp.lt.s32.totalorder %s569, 0
        %s573 = scalar_select %p572, %s569, 0
        %s574 = smul.addr %s571, 2
        %s575 = sadd.s32 %s573, %s574
        %s576 = smul.addr %s575, 4
        %s577 = scalar_lea.vmem %s5, %s576
        %s578 = sadd.s32 %s30, 1
        %p579 = scmp.lt.s32.totalorder %s578, 0
        %s580 = scalar_select %p579, %s578, 0
      $region72: #{decoder_block_forward.2} parent=47 // pred_fallthru
        _
      // Predicated region
      $region73: #{decoder_block_forward.2} parent=47 // pred_check
        %p581 = pneg %p246
      $region74: #{decoder_block_forward.2} parent=47 // pred_check_branch
        %583 = sbr.rel (%p581) target = $region76
      $region75: #{decoder_block_forward.2} parent=47 // pred_region
        %p584 = scmp.lt.s32.totalorder %s29, 1
        %s585 = scalar_select %p584, %s29, 1
        %s586 = smul.addr %s585, 4
        %s587 = smul.addr %s586, 8
        %s588 = scalar_lea.vmem %s6, %s587
      $region76: #{decoder_block_forward.2} parent=47 // pred_fallthru
        _
    $region48: #{decoder_block_forward.2} parent=5 // pred_fallthru
      _
    %p589 = scmp.le.s32.totalorder 1, %s22
    %p590 = scmp.lt.s32.totalorder %s22, 3
    %p591 = pnand %p589, %p590
    %p592 = pneg %p591
    // Predicated region
    $region77: #{decoder_block_forward.2} parent=5 // pred_check
      _
    $region78: #{decoder_block_forward.2} parent=5 // pred_check_branch
      %594 = sbr.rel (%p591) target = $region80
    $region79: #{decoder_block_forward.2} parent=5 // pred_region
      %s595 = ssub.s32 %s22, 1
      %s596 = ssub.s32 %s32, 1
      %p597 = scmp.gt.s32.totalorder %s596, 0
      %s598 = scalar_select %p597, %s596, 0
      %p599 = scmp.lt.s32.totalorder %s31, 1
      %s600 = scalar_select %p599, %s31, 1
      %p601 = scmp.lt.s32.totalorder %s598, 0
      %s602 = scalar_select %p601, %s598, 0
      %s603 = smul.addr %s600, 2
      %s604 = sadd.s32 %s602, %s603
      %s605 = smul.addr %s604, 4
      %s606 = scalar_lea.vmem %s0, %s605
      %p607 = pneg %p68
      %p608 = pneg %p65
      %p609 = scmp.lt.s32.totalorder %s31, 1
      %s610 = scalar_select %p609, %s31, 1
      %p611 = scmp.lt.s32.totalorder %s32, 0
      %s612 = scalar_select %p611, %s32, 0
      %s613 = smul.addr %s610, 2
      %s614 = sadd.s32 %s612, %s613
      %s615 = smul.addr %s614, 4
      %s616 = scalar_lea.vmem %s1, %s615
      %p617 = pneg %p96
      %p618 = pneg %p93
      %s619 = sadd.s32 %s32, 1
      %p620 = scmp.lt.s32.totalorder %s619, 0
      %s621 = scalar_select %p620, %s619, 0
      %p622 = scmp.lt.s32.totalorder %s31, 1
      %s623 = scalar_select %p622, %s31, 1
      %p624 = scmp.lt.s32.totalorder %s621, 0
      %s625 = scalar_select %p624, %s621, 0
      %s626 = smul.addr %s623, 2
      %s627 = sadd.s32 %s625, %s626
      %s628 = smul.addr %s627, 4
      %s629 = scalar_lea.vmem %s2, %s628
      %p630 = pneg %p130
      %p631 = pneg %p127
      %s632 = ssub.s32 %s32, 1
      %p633 = scmp.gt.s32.totalorder %s632, 0
      %s634 = scalar_select %p633, %s632, 0
      %p635 = scmp.lt.s32.totalorder %s31, 1
      %s636 = scalar_select %p635, %s31, 1
      %p637 = scmp.lt.s32.totalorder %s634, 0
      %s638 = scalar_select %p637, %s634, 0
      %s639 = smul.addr %s636, 2
      %s640 = sadd.s32 %s638, %s639
      %s641 = smul.addr %s640, 4
      %s642 = scalar_lea.vmem %s3, %s641
      %p643 = pneg %p164
      %p644 = pneg %p161
      %p645 = scmp.lt.s32.totalorder %s31, 1
      %s646 = scalar_select %p645, %s31, 1
      %p647 = scmp.lt.s32.totalorder %s32, 0
      %s648 = scalar_select %p647, %s32, 0
      %s649 = smul.addr %s646, 2
      %s650 = sadd.s32 %s648, %s649
      %s651 = smul.addr %s650, 4
      %s652 = scalar_lea.vmem %s4, %s651
      %p653 = pneg %p192
      %p654 = pneg %p189
      %s655 = sadd.s32 %s32, 1
      %p656 = scmp.lt.s32.totalorder %s655, 0
      %s657 = scalar_select %p656, %s655, 0
      %p658 = scmp.lt.s32.totalorder %s31, 1
      %s659 = scalar_select %p658, %s31, 1
      %p660 = scmp.lt.s32.totalorder %s657, 0
      %s661 = scalar_select %p660, %s657, 0
      %s662 = smul.addr %s659, 2
      %s663 = sadd.s32 %s661, %s662
      %s664 = smul.addr %s663, 4
      %s665 = scalar_lea.vmem %s5, %s664
      %p666 = pneg %p226
      %p667 = pneg %p223
      %p668 = scmp.lt.s32.totalorder %s31, 1
      %s669 = scalar_select %p668, %s31, 1
      %s670 = smul.addr %s669, 4
      %s671 = smul.addr %s670, 8
      %s672 = scalar_lea.vmem %s6, %s671
      %p673 = pneg %p252
      %p674 = pneg %p249
      %p675 = pneg %p273
      %p676 = pneg %p270
      %p677 = pneg %p294
      %p678 = pneg %p291
      %p679 = pneg %p315
      %p680 = pneg %p312
      %p681 = pneg %p336
      %p682 = pneg %p333
      %p683 = pneg %p357
      %p684 = pneg %p354
      %p685 = pneg %p378
      %p686 = pneg %p375
      %p687 = pneg %p399
      %p688 = pneg %p396
      %p689 = pneg %p420
      %p690 = pneg %p417
      %p691 = pneg %p448
      %p692 = pneg %p445
      %p693 = scmp.lt.s32.totalorder %s31, 1
      %s694 = scalar_select %p693, %s31, 1
      %p695 = scmp.lt.s32.totalorder %s32, 0
      %s696 = scalar_select %p695, %s32, 0
      %s697 = smul.addr %s694, 4
      %s698 = sadd.s32 %s696, %s697
      %s699 = smul.addr %s698, 8
      %s700 = scalar_lea.vmem %s15, %s699
      %s701 = ssub.s32 %s32, 1
      %p702 = scmp.gt.s32.totalorder %s701, 0
      %s703 = scalar_select %p702, %s701, 0
      %p704 = scmp.lt.s32.totalorder %s31, 1
      %s705 = scalar_select %p704, %s31, 1
      %p706 = scmp.lt.s32.totalorder %s703, 0
      %s707 = scalar_select %p706, %s703, 0
      %s708 = smul.addr %s705, 2
      %s709 = sadd.s32 %s707, %s708
      %s710 = smul.addr %s709, 4
      %s711 = scalar_lea.vmem %s0, %s710
      %s712 = ssub.s32 %s32, 1
      %p713 = scmp.gt.s32.totalorder %s712, 0
      %s714 = scalar_select %p713, %s712, 0
      %p715 = scmp.lt.s32.totalorder %s31, 1
      %s716 = scalar_select %p715, %s31, 1
      %p717 = scmp.lt.s32.totalorder %s32, 0
      %s718 = scalar_select %p717, %s32, 0
      %s719 = smul.addr %s716, 2
      %s720 = sadd.s32 %s718, %s719
      %s721 = smul.addr %s720, 4
      %s722 = scalar_lea.vmem %s1, %s721
      %s723 = sadd.s32 %s32, 1
      %p724 = scmp.lt.s32.totalorder %s723, 0
      %s725 = scalar_select %p724, %s723, 0
      %p726 = scmp.lt.s32.totalorder %s31, 1
      %s727 = scalar_select %p726, %s31, 1
      %p728 = scmp.lt.s32.totalorder %s725, 0
      %s729 = scalar_select %p728, %s725, 0
      %s730 = smul.addr %s727, 2
      %s731 = sadd.s32 %s729, %s730
      %s732 = smul.addr %s731, 4
      %s733 = scalar_lea.vmem %s2, %s732
      %s734 = sadd.s32 %s32, 1
      %p735 = scmp.lt.s32.totalorder %s734, 0
      %s736 = scalar_select %p735, %s734, 0
      %s737 = ssub.s32 %s32, 1
      %p738 = scmp.gt.s32.totalorder %s737, 0
      %s739 = scalar_select %p738, %s737, 0
      %p740 = scmp.lt.s32.totalorder %s31, 1
      %s741 = scalar_select %p740, %s31, 1
      %p742 = scmp.lt.s32.totalorder %s739, 0
      %s743 = scalar_select %p742, %s739, 0
      %s744 = smul.addr %s741, 2
      %s745 = sadd.s32 %s743, %s744
      %s746 = smul.addr %s745, 4
      %s747 = scalar_lea.vmem %s3, %s746
      %s748 = ssub.s32 %s32, 1
      %p749 = scmp.gt.s32.totalorder %s748, 0
      %s750 = scalar_select %p749, %s748, 0
      %p751 = scmp.lt.s32.totalorder %s31, 1
      %s752 = scalar_select %p751, %s31, 1
      %p753 = scmp.lt.s32.totalorder %s32, 0
      %s754 = scalar_select %p753, %s32, 0
      %s755 = smul.addr %s752, 2
      %s756 = sadd.s32 %s754, %s755
      %s757 = smul.addr %s756, 4
      %s758 = scalar_lea.vmem %s4, %s757
      %s759 = sadd.s32 %s32, 1
      %p760 = scmp.lt.s32.totalorder %s759, 0
      %s761 = scalar_select %p760, %s759, 0
      %p762 = scmp.lt.s32.totalorder %s31, 1
      %s763 = scalar_select %p762, %s31, 1
      %p764 = scmp.lt.s32.totalorder %s761, 0
      %s765 = scalar_select %p764, %s761, 0
      %s766 = smul.addr %s763, 2
      %s767 = sadd.s32 %s765, %s766
      %s768 = smul.addr %s767, 4
      %s769 = scalar_lea.vmem %s5, %s768
      %s770 = sadd.s32 %s32, 1
      %p771 = scmp.lt.s32.totalorder %s770, 0
      %s772 = scalar_select %p771, %s770, 0
      %p773 = scmp.lt.s32.totalorder %s31, 1
      %s774 = scalar_select %p773, %s31, 1
      %s775 = smul.addr %s774, 4
      %s776 = smul.addr %s775, 8
      %s777 = scalar_lea.vmem %s6, %s776
      %p778 = scmp.lt.s32.totalorder %s31, 1
      %s779 = scalar_select %p778, %s31, 1
      %p780 = scmp.lt.s32.totalorder %s32, 0
      %s781 = scalar_select %p780, %s32, 0
      %s782 = smul.addr %s779, 4
      %s783 = sadd.s32 %s781, %s782
      %s784 = smul.addr %s783, 8
      %s785 = scalar_lea.vmem %s15, %s784
      %v787 = vld [vmem:[%s711] sm:$0xf]
      %v788 = vld [vmem:[%s711 + $0x4] sm:$0xf]
      %v789 = vld [vmem:[%s722] sm:$0xf]
      %v790 = vld [vmem:[%s722 + $0x4] sm:$0xf]
      %v791 = vld [vmem:[%s733] sm:$0xf]
      %v792 = vld [vmem:[%s733 + $0x4] sm:$0xf]
      %v795 = vunpack.c.l.b16 %v787
      %v796 = vunpack.c.l.b16 %v788
      %v797 = vpack.c.b16 %v796, %v795
      %v800 = vunpack.c.l.b16 %v789
      %v801 = vunpack.c.l.b16 %v790
      %v802 = vpack.c.b16 %v801, %v800
      %803 = vrot.lane.b32.xlu0 %v802, 16
      %v804 = vpop.permute.xlu0 %803
      %v807 = vunpack.c.l.b16 %v791
      %v808 = vunpack.c.l.b16 %v792
      %v809 = vpack.c.b16 %v808, %v807
      %810 = vrot.lane.b32.xlu0 %v809, 32
      %v811 = vpop.permute.xlu0 %810
      %vm812 = vcmask 130048
      %v815 = vsel %vm812, %v797, %v804
      %vm816 = vcmask 261120
      %v818 = vsel %vm816, %v815, %v811
      %v820 = vld [vmem:[%s747] sm:$0xf]
      %v821 = vld [vmem:[%s747 + $0x4] sm:$0xf]
      %v822 = vld [vmem:[%s758] sm:$0xf]
      %v823 = vld [vmem:[%s758 + $0x4] sm:$0xf]
      %v824 = vld [vmem:[%s769] sm:$0xf]
      %v825 = vld [vmem:[%s769 + $0x4] sm:$0xf]
      %v828 = vunpack.c.l.b16 %v820
      %v829 = vunpack.c.l.b16 %v821
      %v830 = vpack.c.b16 %v829, %v828
      %v833 = vunpack.c.l.b16 %v822
      %v834 = vunpack.c.l.b16 %v823
      %v835 = vpack.c.b16 %v834, %v833
      %836 = vrot.lane.b32.xlu0 %v835, 16
      %v837 = vpop.permute.xlu0 %836
      %v840 = vunpack.c.l.b16 %v824
      %v841 = vunpack.c.l.b16 %v825
      %v842 = vpack.c.b16 %v841, %v840
      %843 = vrot.lane.b32.xlu0 %v842, 32
      %v844 = vpop.permute.xlu0 %843
      %v847 = vsel %vm812, %v830, %v837
      %v849 = vsel %vm816, %v847, %v844
      %v851 = vlaneseq
      %v852 = vand.u32 %v851, 127
      %s853 = smul.u32 %s32, 16
      %s854 = ssub.s32 %s853, 16
      %v855 = vstv %s854
      %v856 = vadd.s32 %v852, %v855
      %vm857 = vcmp.ge.s32.totalorder %v856, 0
      %vm858 = vcmp.lt.s32.totalorder %v856, 16
      %vm859 = vmand %vm857, %vm858
      %v860 = vsel %vm859, 1, 0
      %v861 = vcvt.s32.f32 %v860
      %v862 = vld [vmem:[%s7] sm:$0xff]
      %v863 = vld [vmem:[%s7 + $0x8] sm:$0xff]
      %v864 = vld [vmem:[%s7 + $0x10] sm:$0xff]
      %v865 = vld [vmem:[%s7 + $0x18] sm:$0xff]
      %v866 = vunpack.c.l.bf16 %v818
      %v867 = vunpack.c.h.bf16 %v818
      %v868 = vunpack.c.l.bf16 %v849
      %v869 = vunpack.c.h.bf16 %v849
      %871 = vset.pattern.permute.xlu0 0
      %872 = vperm.xlu0 %871, %v862
      %v873 = vpop.permute.xlu0 %872
      %876 = vset.pattern.permute.xlu0 0
      %877 = vperm.xlu0 %876, %v863
      %v878 = vpop.permute.xlu0 %877
      %881 = vset.pattern.permute.xlu0 0
      %882 = vperm.xlu0 %881, %v864
      %v883 = vpop.permute.xlu0 %882
      %886 = vset.pattern.permute.xlu0 0
      %887 = vperm.xlu0 %886, %v865
      %v888 = vpop.permute.xlu0 %887
      %v890 = vmul.f32 %v866, %v873
      %v891 = vmul.f32 %v867, %v878
      %v892 = vmul.f32 %v868, %v883
      %v893 = vmul.f32 %v869, %v888
      %vm894 = vcmask 392192
      %v895 = vsel %vm894, %v890, 0.0
      %v896 = vsel %vm894, %v891, 0.0
      %v897 = vadd.f32 %v895, %v896
      %v898 = vsel %vm894, %v892, 0.0
      %v899 = vadd.f32 %v897, %v898
      %v900 = vsel %vm894, %v893, 0.0
      %v901 = vadd.f32 %v899, %v900
      %v902 = vrot.slane %v901, 4
      %v903 = vadd.f32 %v901, %v902
      %v904 = vrot.slane %v903, 2
      %v905 = vadd.f32 %v903, %v904
      %v906 = vrot.slane %v905, 1
      %v907 = vadd.f32 %v905, %v906
      %s908 = sld [smem:[#allocation2]]
      %v909 = vstv %s908
      %v910 = vadd.f32 %v907, %v909
      %v911 = vxor.u32 %v910, 2147483648
      %v912 = vmul.f32 %v911, 1.442695
      %v913 = vpow.pop %v912
      %v914 = vadd.f32 %v913, 1.0
      %v915 = vrcp.pop %v914
      %v916 = vmul.f32 1.0, %v915
      %v917 = vld [vmem:[%s777] sm:$0xff]
      %v918 = vld [vmem:[%s777 + $0x8] sm:$0xff]
      %v919 = vld [vmem:[%s777 + $0x10] sm:$0xff]
      %v920 = vld [vmem:[%s777 + $0x18] sm:$0xff]
      %922 = vset.pattern.permute.xlu0 0
      %923 = vperm.xlu0 %922, %v917
      %v924 = vpop.permute.xlu0 %923
      %927 = vset.pattern.permute.xlu0 0
      %928 = vperm.xlu0 %927, %v918
      %v929 = vpop.permute.xlu0 %928
      %932 = vset.pattern.permute.xlu0 0
      %933 = vperm.xlu0 %932, %v919
      %v934 = vpop.permute.xlu0 %933
      %937 = vset.pattern.permute.xlu0 0
      %938 = vperm.xlu0 %937, %v920
      %v939 = vpop.permute.xlu0 %938
      %v941 = vadd.f32 %v924, %v916
      %v942 = vadd.f32 %v929, %v916
      %v943 = vadd.f32 %v934, %v916
      %v944 = vadd.f32 %v939, %v916
      %v945 = vmul.f32 %v866, %v941
      %v946 = vmul.f32 %v867, %v942
      %v947 = vmul.f32 %v868, %v943
      %v948 = vmul.f32 %v869, %v944
      %v949 = vmul.f32 %v945, %v861
      %v950 = vmul.f32 %v946, %v861
      %v951 = vmul.f32 %v947, %v861
      %v952 = vmul.f32 %v948, %v861
      %v953 = vld [vmem:[%s9] sm:$0xf]
      %v954 = vld [vmem:[%s9 + $0x4] sm:$0xf]
      %v955 = vld [vmem:[%s9 + $0x8] sm:$0xf]
      %v956 = vld [vmem:[%s9 + $0xc] sm:$0xf]
      %v957 = vld [vmem:[%s9 + $0x10] sm:$0xf]
      %v958 = vld [vmem:[%s9 + $0x14] sm:$0xf]
      %v959 = vld [vmem:[%s9 + $0x18] sm:$0xf]
      %v960 = vld [vmem:[%s9 + $0x1c] sm:$0xf]
      %v961 = vld [vmem:[%s9 + $0x20] sm:$0xf]
      %v962 = vld [vmem:[%s9 + $0x24] sm:$0xf]
      %v963 = vld [vmem:[%s9 + $0x28] sm:$0xf]
      %v964 = vld [vmem:[%s9 + $0x2c] sm:$0xf]
      %v965 = vpack.c.bf16 %v950, %v949
      %v966 = vpack.c.bf16 %v952, %v951
      %v979 = vunpack.c.l.b16 %v953
      %v980 = vunpack.c.l.b16 %v954
      %v981 = vunpack.c.l.b16 %v955
      %v982 = vunpack.c.l.b16 %v956
      %v983 = vunpack.c.l.b16 %v957
      %v984 = vunpack.c.l.b16 %v958
      %v985 = vunpack.c.l.b16 %v959
      %v986 = vunpack.c.l.b16 %v960
      %v987 = vunpack.c.l.b16 %v961
      %v988 = vunpack.c.l.b16 %v962
      %v989 = vunpack.c.l.b16 %v963
      %v990 = vunpack.c.l.b16 %v964
      %v991 = vpack.c.b16 %v980, %v979
      %v992 = vpack.c.b16 %v982, %v981
      %v993 = vpack.c.b16 %v984, %v983
      %v994 = vpack.c.b16 %v986, %v985
      %v995 = vpack.c.b16 %v988, %v987
      %v996 = vpack.c.b16 %v990, %v989
      %v998 = vsel %vm816, %v991, 0
      %v1001 = vsel %vm816, %v992, 0
      %v1004 = vsel %vm816, %v993, 0
      %v1007 = vsel %vm816, %v994, 0
      %v1010 = vsel %vm816, %v995, 0
      %v1013 = vsel %vm816, %v996, 0
      %1015 = vmatprep.subr.bf16.mxu0 0
      %1016 = vmatpush1.bf16.msra.mxu0 %v965
      %1017 = vmatprep.subr.bf16.mxu0 0
      %1018 = vmatpush1.bf16.msra.mxu0 %v966
      %1019 = vmatprep.subr.bf16.mxu0 0
      %1020 = vmatpush1.bf16.msra.mxu0 0
      %1021 = vmatprep.subr.bf16.mxu0 0
      %1022 = vmatpush1.bf16.msra.mxu0 0
      %1023 = vmatprep.subr.bf16.mxu0 0
      %1024 = vmatpush1.bf16.msra.mxu0 0
      %1025 = vmatprep.subr.bf16.mxu0 0
      %1026 = vmatpush1.bf16.msra.mxu0 0
      %1027 = vmatprep.subr.bf16.mxu0 0
      %1028 = vmatpush1.bf16.msra.mxu0 0
      %1029 = vmatprep.subr.bf16.mxu0 0
      %1030 = vmatpush1.bf16.msra.mxu0 0
      %1031 = vmatprep.subr.bf16.mxu0 0
      %1032 = vmatpush1.bf16.msra.mxu0 0
      %1033 = vmatprep.subr.bf16.mxu0 0
      %1034 = vmatpush1.bf16.msra.mxu0 0
      %1035 = vmatprep.subr.bf16.mxu0 0
      %1036 = vmatpush1.bf16.msra.mxu0 0
      %1037 = vmatprep.subr.bf16.mxu0 0
      %1038 = vmatpush1.bf16.msra.mxu0 0
      %1039 = vmatprep.subr.bf16.mxu0 0
      %1040 = vmatpush1.bf16.msra.mxu0 0
      %1041 = vmatprep.subr.bf16.mxu0 0
      %1042 = vmatpush1.bf16.msra.mxu0 0
      %1043 = vmatprep.subr.bf16.mxu0 0
      %1044 = vmatpush1.bf16.msra.mxu0 0
      %1045 = vmatprep.subr.bf16.mxu0 0
      %1046 = vmatpush1.bf16.msra.mxu0 0
      %1047 = vmatprep.mubr.bf16.mxu0 0
      %1048 = vmatmul.mubr.bf16.gmra.mrb[0].mxu0 %v998
      %v1049 = vpop.f32.mrb[0].mxu0
      %v1050 = vadd.f32 0.0, %v1049
      %v1051 = vpop.f32.mrb[0].mxu0
      %v1052 = vpop.f32.mrb[0].mxu0
      %v1053 = vadd.f32 0.0, %v1052
      %v1054 = vpop.f32.mrb[0].mxu0
      %1055 = vmatprep.mubr.bf16.mxu0 0
      %1056 = vmatmul.mubr.bf16.gmra.mrb[0].mxu0 %v1001
      %v1057 = vpop.f32.mrb[0].mxu0
      %v1058 = vadd.f32 0.0, %v1057
      %v1059 = vpop.f32.mrb[0].mxu0
      %v1060 = vpop.f32.mrb[0].mxu0
      %v1061 = vadd.f32 0.0, %v1060
      %v1062 = vpop.f32.mrb[0].mxu0
      %1063 = vmatprep.mubr.bf16.mxu0 0
      %1064 = vmatmul.mubr.bf16.gmra.mrb[0].mxu0 %v1004
      %v1065 = vpop.f32.mrb[0].mxu0
      %v1066 = vadd.f32 0.0, %v1065
      %v1067 = vpop.f32.mrb[0].mxu0
      %v1068 = vpop.f32.mrb[0].mxu0
      %v1069 = vadd.f32 0.0, %v1068
      %v1070 = vpop.f32.mrb[0].mxu0
      %1071 = vmatprep.mubr.bf16.mxu0 0
      %1072 = vmatmul.mubr.bf16.gmra.mrb[0].mxu0 %v1007
      %v1073 = vpop.f32.mrb[0].mxu0
      %v1074 = vadd.f32 0.0, %v1073
      %v1075 = vpop.f32.mrb[0].mxu0
      %v1076 = vpop.f32.mrb[0].mxu0
      %v1077 = vadd.f32 0.0, %v1076
      %v1078 = vpop.f32.mrb[0].mxu0
      %1079 = vmatprep.mubr.bf16.mxu0 0
      %1080 = vmatmul.mubr.bf16.gmra.mrb[0].mxu0 %v1010
      %v1081 = vpop.f32.mrb[0].mxu0
      %v1082 = vadd.f32 0.0, %v1081
      %v1083 = vpop.f32.mrb[0].mxu0
      %v1084 = vpop.f32.mrb[0].mxu0
      %v1085 = vadd.f32 0.0, %v1084
      %v1086 = vpop.f32.mrb[0].mxu0
      %1087 = vmatprep.mubr.bf16.mxu0 0
      %1088 = vmatmul.mubr.bf16.gmra.mrb[0].mxu0 %v1013
      %v1089 = vpop.f32.mrb[0].mxu0
      %v1090 = vadd.f32 0.0, %v1089
      %v1091 = vpop.f32.mrb[0].mxu0
      %v1092 = vpop.f32.mrb[0].mxu0
      %v1093 = vadd.f32 0.0, %v1092
      %v1094 = vpop.f32.mrb[0].mxu0
      %1095 = vdwg.mxu0
      %vm1096 = vcmask 1047936
      %1097 = vrot.lane.b32.xlu0 %v1050, 48
      %v1098 = vpop.permute.xlu0 %1097
      %v1099 = vsel %vm1096, %v1098, %v1050
      %1100 = vrot.lane.b32.xlu0 %v1053, 48
      %v1101 = vpop.permute.xlu0 %1100
      %v1102 = vsel %vm1096, %v1101, %v1053
      %1103 = vrot.lane.b32.xlu0 %v1058, 48
      %v1104 = vpop.permute.xlu0 %1103
      %v1105 = vsel %vm1096, %v1104, %v1058
      %1106 = vrot.lane.b32.xlu0 %v1061, 48
      %v1107 = vpop.permute.xlu0 %1106
      %v1108 = vsel %vm1096, %v1107, %v1061
      %1109 = vrot.lane.b32.xlu0 %v1099, 48
      %v1110 = vpop.permute.xlu0 %1109
      %1111 = vrot.lane.b32.xlu0 %v1102, 48
      %v1112 = vpop.permute.xlu0 %1111
      %1113 = vrot.lane.b32.xlu0 %v1105, 48
      %v1114 = vpop.permute.xlu0 %1113
      %1115 = vrot.lane.b32.xlu0 %v1108, 48
      %v1116 = vpop.permute.xlu0 %1115
      %v1117 = vsel %vm1096, %v1110, %v1050
      %v1118 = vsel %vm1096, %v1112, %v1053
      %v1119 = vsel %vm1096, %v1114, %v1058
      %v1120 = vsel %vm1096, %v1116, %v1061
      %1125 = vrot.lane.b32.xlu0 %v1066, 47
      %v1126 = vpop.permute.xlu0 %1125
      %1127 = vrot.lane.b32.xlu0 %v1069, 47
      %v1128 = vpop.permute.xlu0 %1127
      %1129 = vrot.lane.b32.xlu0 %v1074, 47
      %v1130 = vpop.permute.xlu0 %1129
      %1131 = vrot.lane.b32.xlu0 %v1077, 47
      %v1132 = vpop.permute.xlu0 %1131
      %v1137 = vadd.f32 %v1117, %v1126
      %v1138 = vadd.f32 %v1118, %v1128
      %v1139 = vadd.f32 %v1119, %v1130
      %v1140 = vadd.f32 %v1120, %v1132
      %1141 = vrot.lane.b32.xlu0 %v1082, 48
      %v1142 = vpop.permute.xlu0 %1141
      %v1143 = vsel %vm1096, %v1142, %v1082
      %1144 = vrot.lane.b32.xlu0 %v1085, 48
      %v1145 = vpop.permute.xlu0 %1144
      %v1146 = vsel %vm1096, %v1145, %v1085
      %1147 = vrot.lane.b32.xlu0 %v1090, 48
      %v1148 = vpop.permute.xlu0 %1147
      %v1149 = vsel %vm1096, %v1148, %v1090
      %1150 = vrot.lane.b32.xlu0 %v1093, 48
      %v1151 = vpop.permute.xlu0 %1150
      %v1152 = vsel %vm1096, %v1151, %v1093
      %1153 = vrot.lane.b32.xlu0 %v1143, 48
      %v1154 = vpop.permute.xlu0 %1153
      %1155 = vrot.lane.b32.xlu0 %v1146, 48
      %v1156 = vpop.permute.xlu0 %1155
      %1157 = vrot.lane.b32.xlu0 %v1149, 48
      %v1158 = vpop.permute.xlu0 %1157
      %1159 = vrot.lane.b32.xlu0 %v1152, 48
      %v1160 = vpop.permute.xlu0 %1159
      %v1161 = vsel %vm1096, %v1154, %v1082
      %v1162 = vsel %vm1096, %v1156, %v1085
      %v1163 = vsel %vm1096, %v1158, %v1090
      %v1164 = vsel %vm1096, %v1160, %v1093
      %1169 = vrot.lane.b32.xlu0 %v1161, 46
      %v1170 = vpop.permute.xlu0 %1169
      %1171 = vrot.lane.b32.xlu0 %v1162, 46
      %v1172 = vpop.permute.xlu0 %1171
      %1173 = vrot.lane.b32.xlu0 %v1163, 46
      %v1174 = vpop.permute.xlu0 %1173
      %1175 = vrot.lane.b32.xlu0 %v1164, 46
      %v1176 = vpop.permute.xlu0 %1175
      %v1181 = vadd.f32 %v1137, %v1170
      %v1182 = vadd.f32 %v1138, %v1172
      %v1183 = vadd.f32 %v1139, %v1174
      %v1184 = vadd.f32 %v1140, %v1176
      %v1185 = vld [vmem:[%s10] sm:$0xff]
      %v1186 = vld [vmem:[%s10 + $0x8] sm:$0xff]
      %v1187 = vld [vmem:[%s10 + $0x10] sm:$0xff]
      %v1188 = vld [vmem:[%s10 + $0x18] sm:$0xff]
      %1190 = vset.pattern.permute.xlu0 0
      %1191 = vperm.xlu0 %1190, %v1185
      %v1192 = vpop.permute.xlu0 %1191
      %1195 = vset.pattern.permute.xlu0 0
      %1196 = vperm.xlu0 %1195, %v1186
      %v1197 = vpop.permute.xlu0 %1196
      %1200 = vset.pattern.permute.xlu0 0
      %1201 = vperm.xlu0 %1200, %v1187
      %v1202 = vpop.permute.xlu0 %1201
      %1205 = vset.pattern.permute.xlu0 0
      %1206 = vperm.xlu0 %1205, %v1188
      %v1207 = vpop.permute.xlu0 %1206
      %v1209 = vmul.f32 %v1181, %v1192
      %v1210 = vmul.f32 %v1182, %v1197
      %v1211 = vmul.f32 %v1183, %v1202
      %v1212 = vmul.f32 %v1184, %v1207
      %v1213 = vld [vmem:[%s11] sm:$0xff]
      %v1214 = vld [vmem:[%s11 + $0x8] sm:$0xff]
      %v1215 = vld [vmem:[%s11 + $0x10] sm:$0xff]
      %v1216 = vld [vmem:[%s11 + $0x18] sm:$0xff]
      %1218 = vset.pattern.permute.xlu0 0
      %1219 = vperm.xlu0 %1218, %v1213
      %v1220 = vpop.permute.xlu0 %1219
      %1223 = vset.pattern.permute.xlu0 0
      %1224 = vperm.xlu0 %1223, %v1214
      %v1225 = vpop.permute.xlu0 %1224
      %1228 = vset.pattern.permute.xlu0 0
      %1229 = vperm.xlu0 %1228, %v1215
      %v1230 = vpop.permute.xlu0 %1229
      %1233 = vset.pattern.permute.xlu0 0
      %1234 = vperm.xlu0 %1233, %v1216
      %v1235 = vpop.permute.xlu0 %1234
      %v1237 = vadd.f32 %v1209, %v1220
      %v1238 = vadd.f32 %v1210, %v1225
      %v1239 = vadd.f32 %v1211, %v1230
      %v1240 = vadd.f32 %v1212, %v1235
      %v1241 = vmax.f32 %v1237, 0.0
      %v1242 = vmax.f32 %v1238, 0.0
      %v1243 = vmax.f32 %v1239, 0.0
      %v1244 = vmax.f32 %v1240, 0.0
      %1246 = vrot.lane.b32.xlu0 %v861, 47
      %v1247 = vpop.permute.xlu0 %1246
      %v1249 = vmul.f32 %v1241, %v1247
      %v1250 = vmul.f32 %v1242, %v1247
      %v1251 = vmul.f32 %v1243, %v1247
      %v1252 = vmul.f32 %v1244, %v1247
      %v1253 = vld [vmem:[%s12] sm:$0xf]
      %v1254 = vld [vmem:[%s12 + $0x4] sm:$0xf]
      %v1255 = vld [vmem:[%s12 + $0x8] sm:$0xf]
      %v1256 = vld [vmem:[%s12 + $0xc] sm:$0xf]
      %v1257 = vld [vmem:[%s12 + $0x10] sm:$0xf]
      %v1258 = vld [vmem:[%s12 + $0x14] sm:$0xf]
      %v1259 = vld [vmem:[%s12 + $0x18] sm:$0xf]
      %v1260 = vld [vmem:[%s12 + $0x1c] sm:$0xf]
      %v1261 = vld [vmem:[%s12 + $0x20] sm:$0xf]
      %v1262 = vld [vmem:[%s12 + $0x24] sm:$0xf]
      %v1263 = vld [vmem:[%s12 + $0x28] sm:$0xf]
      %v1264 = vld [vmem:[%s12 + $0x2c] sm:$0xf]
      %v1265 = vpack.c.bf16 %v1250, %v1249
      %v1266 = vpack.c.bf16 %v1252, %v1251
      %v1279 = vunpack.c.l.b16 %v1253
      %v1280 = vunpack.c.l.b16 %v1254
      %v1281 = vunpack.c.l.b16 %v1255
      %v1282 = vunpack.c.l.b16 %v1256
      %v1283 = vunpack.c.l.b16 %v1257
      %v1284 = vunpack.c.l.b16 %v1258
      %v1285 = vunpack.c.l.b16 %v1259
      %v1286 = vunpack.c.l.b16 %v1260
      %v1287 = vunpack.c.l.b16 %v1261
      %v1288 = vunpack.c.l.b16 %v1262
      %v1289 = vunpack.c.l.b16 %v1263
      %v1290 = vunpack.c.l.b16 %v1264
      %v1291 = vpack.c.b16 %v1280, %v1279
      %v1292 = vpack.c.b16 %v1282, %v1281
      %v1293 = vpack.c.b16 %v1284, %v1283
      %v1294 = vpack.c.b16 %v1286, %v1285
      %v1295 = vpack.c.b16 %v1288, %v1287
      %v1296 = vpack.c.b16 %v1290, %v1289
      %1299 = vrot.lane.b32.xlu0 %v1265, 81
      %v1300 = vpop.permute.xlu0 %1299
      %1301 = vrot.lane.b32.xlu0 %v1266, 81
      %v1302 = vpop.permute.xlu0 %1301
      %v1306 = vsel %vm816, %v1291, 0
      %v1309 = vsel %vm816, %v1292, 0
      %v1312 = vsel %vm816, %v1293, 0
      %v1315 = vsel %vm816, %v1294, 0
      %v1318 = vsel %vm816, %v1295, 0
      %v1321 = vsel %vm816, %v1296, 0
      %1323 = vmatprep.subr.bf16.mxu0 0
      %1324 = vmatpush1.bf16.msra.mxu0 %v1300
      %1325 = vmatprep.subr.bf16.mxu0 0
      %1326 = vmatpush1.bf16.msra.mxu0 %v1302
      %1327 = vmatprep.subr.bf16.mxu0 0
      %1328 = vmatpush1.bf16.msra.mxu0 0
      %1329 = vmatprep.subr.bf16.mxu0 0
      %1330 = vmatpush1.bf16.msra.mxu0 0
      %1331 = vmatprep.subr.bf16.mxu0 0
      %1332 = vmatpush1.bf16.msra.mxu0 0
      %1333 = vmatprep.subr.bf16.mxu0 0
      %1334 = vmatpush1.bf16.msra.mxu0 0
      %1335 = vmatprep.subr.bf16.mxu0 0
      %1336 = vmatpush1.bf16.msra.mxu0 0
      %1337 = vmatprep.subr.bf16.mxu0 0
      %1338 = vmatpush1.bf16.msra.mxu0 0
      %1339 = vmatprep.subr.bf16.mxu0 0
      %1340 = vmatpush1.bf16.msra.mxu0 0
      %1341 = vmatprep.subr.bf16.mxu0 0
      %1342 = vmatpush1.bf16.msra.mxu0 0
      %1343 = vmatprep.subr.bf16.mxu0 0
      %1344 = vmatpush1.bf16.msra.mxu0 0
      %1345 = vmatprep.subr.bf16.mxu0 0
      %1346 = vmatpush1.bf16.msra.mxu0 0
      %1347 = vmatprep.subr.bf16.mxu0 0
      %1348 = vmatpush1.bf16.msra.mxu0 0
      %1349 = vmatprep.subr.bf16.mxu0 0
      %1350 = vmatpush1.bf16.msra.mxu0 0
      %1351 = vmatprep.subr.bf16.mxu0 0
      %1352 = vmatpush1.bf16.msra.mxu0 0
      %1353 = vmatprep.subr.bf16.mxu0 0
      %1354 = vmatpush1.bf16.msra.mxu0 0
      %1355 = vmatprep.mubr.bf16.mxu0 0
      %1356 = vmatmul.mubr.bf16.gmra.mrb[0].mxu0 %v1306
      %v1357 = vpop.f32.mrb[0].mxu0
      %v1358 = vadd.f32 0.0, %v1357
      %v1359 = vpop.f32.mrb[0].mxu0
      %v1360 = vpop.f32.mrb[0].mxu0
      %v1361 = vadd.f32 0.0, %v1360
      %v1362 = vpop.f32.mrb[0].mxu0
      %1363 = vmatprep.mubr.bf16.mxu0 0
      %1364 = vmatmul.mubr.bf16.gmra.mrb[0].mxu0 %v1309
      %v1365 = vpop.f32.mrb[0].mxu0
      %v1366 = vadd.f32 0.0, %v1365
      %v1367 = vpop.f32.mrb[0].mxu0
      %v1368 = vpop.f32.mrb[0].mxu0
      %v1369 = vadd.f32 0.0, %v1368
      %v1370 = vpop.f32.mrb[0].mxu0
      %1371 = vmatprep.mubr.bf16.mxu0 0
      %1372 = vmatmul.mubr.bf16.gmra.mrb[0].mxu0 %v1312
      %v1373 = vpop.f32.mrb[0].mxu0
      %v1374 = vadd.f32 0.0, %v1373
      %v1375 = vpop.f32.mrb[0].mxu0
      %v1376 = vpop.f32.mrb[0].mxu0
      %v1377 = vadd.f32 0.0, %v1376
      %v1378 = vpop.f32.mrb[0].mxu0
      %1379 = vmatprep.mubr.bf16.mxu0 0
      %1380 = vmatmul.mubr.bf16.gmra.mrb[0].mxu0 %v1315
      %v1381 = vpop.f32.mrb[0].mxu0
      %v1382 = vadd.f32 0.0, %v1381
      %v1383 = vpop.f32.mrb[0].mxu0
      %v1384 = vpop.f32.mrb[0].mxu0
      %v1385 = vadd.f32 0.0, %v1384
      %v1386 = vpop.f32.mrb[0].mxu0
      %1387 = vmatprep.mubr.bf16.mxu0 0
      %1388 = vmatmul.mubr.bf16.gmra.mrb[0].mxu0 %v1318
      %v1389 = vpop.f32.mrb[0].mxu0
      %v1390 = vadd.f32 0.0, %v1389
      %v1391 = vpop.f32.mrb[0].mxu0
      %v1392 = vpop.f32.mrb[0].mxu0
      %v1393 = vadd.f32 0.0, %v1392
      %v1394 = vpop.f32.mrb[0].mxu0
      %1395 = vmatprep.mubr.bf16.mxu0 0
      %1396 = vmatmul.mubr.bf16.gmra.mrb[0].mxu0 %v1321
      %v1397 = vpop.f32.mrb[0].mxu0
      %v1398 = vadd.f32 0.0, %v1397
      %v1399 = vpop.f32.mrb[0].mxu0
      %v1400 = vpop.f32.mrb[0].mxu0
      %v1401 = vadd.f32 0.0, %v1400
      %v1402 = vpop.f32.mrb[0].mxu0
      %1403 = vdwg.mxu0
      %1404 = vrot.lane.b32.xlu0 %v1358, 48
      %v1405 = vpop.permute.xlu0 %1404
      %v1406 = vsel %vm1096, %v1405, %v1358
      %1407 = vrot.lane.b32.xlu0 %v1361, 48
      %v1408 = vpop.permute.xlu0 %1407
      %v1409 = vsel %vm1096, %v1408, %v1361
      %1410 = vrot.lane.b32.xlu0 %v1366, 48
      %v1411 = vpop.permute.xlu0 %1410
      %v1412 = vsel %vm1096, %v1411, %v1366
      %1413 = vrot.lane.b32.xlu0 %v1369, 48
      %v1414 = vpop.permute.xlu0 %1413
      %v1415 = vsel %vm1096, %v1414, %v1369
      %1416 = vrot.lane.b32.xlu0 %v1406, 48
      %v1417 = vpop.permute.xlu0 %1416
      %1418 = vrot.lane.b32.xlu0 %v1409, 48
      %v1419 = vpop.permute.xlu0 %1418
      %1420 = vrot.lane.b32.xlu0 %v1412, 48
      %v1421 = vpop.permute.xlu0 %1420
      %1422 = vrot.lane.b32.xlu0 %v1415, 48
      %v1423 = vpop.permute.xlu0 %1422
      %v1424 = vsel %vm1096, %v1417, %v1358
      %v1425 = vsel %vm1096, %v1419, %v1361
      %v1426 = vsel %vm1096, %v1421, %v1366
      %v1427 = vsel %vm1096, %v1423, %v1369
      %1432 = vrot.lane.b32.xlu0 %v1374, 47
      %v1433 = vpop.permute.xlu0 %1432
      %1434 = vrot.lane.b32.xlu0 %v1377, 47
      %v1435 = vpop.permute.xlu0 %1434
      %1436 = vrot.lane.b32.xlu0 %v1382, 47
      %v1437 = vpop.permute.xlu0 %1436
      %1438 = vrot.lane.b32.xlu0 %v1385, 47
      %v1439 = vpop.permute.xlu0 %1438
      %v1444 = vadd.f32 %v1424, %v1433
      %v1445 = vadd.f32 %v1425, %v1435
      %v1446 = vadd.f32 %v1426, %v1437
      %v1447 = vadd.f32 %v1427, %v1439
      %1448 = vrot.lane.b32.xlu0 %v1390, 48
      %v1449 = vpop.permute.xlu0 %1448
      %v1450 = vsel %vm1096, %v1449, %v1390
      %1451 = vrot.lane.b32.xlu0 %v1393, 48
      %v1452 = vpop.permute.xlu0 %1451
      %v1453 = vsel %vm1096, %v1452, %v1393
      %1454 = vrot.lane.b32.xlu0 %v1398, 48
      %v1455 = vpop.permute.xlu0 %1454
      %v1456 = vsel %vm1096, %v1455, %v1398
      %1457 = vrot.lane.b32.xlu0 %v1401, 48
      %v1458 = vpop.permute.xlu0 %1457
      %v1459 = vsel %vm1096, %v1458, %v1401
      %1460 = vrot.lane.b32.xlu0 %v1450, 48
      %v1461 = vpop.permute.xlu0 %1460
      %1462 = vrot.lane.b32.xlu0 %v1453, 48
      %v1463 = vpop.permute.xlu0 %1462
      %1464 = vrot.lane.b32.xlu0 %v1456, 48
      %v1465 = vpop.permute.xlu0 %1464
      %1466 = vrot.lane.b32.xlu0 %v1459, 48
      %v1467 = vpop.permute.xlu0 %1466
      %v1468 = vsel %vm1096, %v1461, %v1390
      %v1469 = vsel %vm1096, %v1463, %v1393
      %v1470 = vsel %vm1096, %v1465, %v1398
      %v1471 = vsel %vm1096, %v1467, %v1401
      %1476 = vrot.lane.b32.xlu0 %v1468, 46
      %v1477 = vpop.permute.xlu0 %1476
      %1478 = vrot.lane.b32.xlu0 %v1469, 46
      %v1479 = vpop.permute.xlu0 %1478
      %1480 = vrot.lane.b32.xlu0 %v1470, 46
      %v1481 = vpop.permute.xlu0 %1480
      %1482 = vrot.lane.b32.xlu0 %v1471, 46
      %v1483 = vpop.permute.xlu0 %1482
      %v1488 = vadd.f32 %v1444, %v1477
      %v1489 = vadd.f32 %v1445, %v1479
      %v1490 = vadd.f32 %v1446, %v1481
      %v1491 = vadd.f32 %v1447, %v1483
      %v1492 = vld [vmem:[%s13] sm:$0xff]
      %v1493 = vld [vmem:[%s13 + $0x8] sm:$0xff]
      %v1494 = vld [vmem:[%s13 + $0x10] sm:$0xff]
      %v1495 = vld [vmem:[%s13 + $0x18] sm:$0xff]
      %1497 = vset.pattern.permute.xlu0 0
      %1498 = vperm.xlu0 %1497, %v1492
      %v1499 = vpop.permute.xlu0 %1498
      %1502 = vset.pattern.permute.xlu0 0
      %1503 = vperm.xlu0 %1502, %v1493
      %v1504 = vpop.permute.xlu0 %1503
      %1507 = vset.pattern.permute.xlu0 0
      %1508 = vperm.xlu0 %1507, %v1494
      %v1509 = vpop.permute.xlu0 %1508
      %1512 = vset.pattern.permute.xlu0 0
      %1513 = vperm.xlu0 %1512, %v1495
      %v1514 = vpop.permute.xlu0 %1513
      %v1516 = vmul.f32 %v1488, %v1499
      %v1517 = vmul.f32 %v1489, %v1504
      %v1518 = vmul.f32 %v1490, %v1509
      %v1519 = vmul.f32 %v1491, %v1514
      %v1520 = vld [vmem:[%s14] sm:$0xff]
      %v1521 = vld [vmem:[%s14 + $0x8] sm:$0xff]
      %v1522 = vld [vmem:[%s14 + $0x10] sm:$0xff]
      %v1523 = vld [vmem:[%s14 + $0x18] sm:$0xff]
      %1525 = vset.pattern.permute.xlu0 0
      %1526 = vperm.xlu0 %1525, %v1520
      %v1527 = vpop.permute.xlu0 %1526
      %1530 = vset.pattern.permute.xlu0 0
      %1531 = vperm.xlu0 %1530, %v1521
      %v1532 = vpop.permute.xlu0 %1531
      %1535 = vset.pattern.permute.xlu0 0
      %1536 = vperm.xlu0 %1535, %v1522
      %v1537 = vpop.permute.xlu0 %1536
      %1540 = vset.pattern.permute.xlu0 0
      %1541 = vperm.xlu0 %1540, %v1523
      %v1542 = vpop.permute.xlu0 %1541
      %v1544 = vadd.f32 %v1516, %v1527
      %v1545 = vadd.f32 %v1517, %v1532
      %v1546 = vadd.f32 %v1518, %v1537
      %v1547 = vadd.f32 %v1519, %v1542
      %v1548 = vmax.f32 %v1544, 0.0
      %v1549 = vmax.f32 %v1545, 0.0
      %v1550 = vmax.f32 %v1546, 0.0
      %v1551 = vmax.f32 %v1547, 0.0
      %1556 = vrot.lane.b32.xlu0 %v1548, 65
      %v1557 = vpop.permute.xlu0 %1556
      %1558 = vrot.lane.b32.xlu0 %v1549, 65
      %v1559 = vpop.permute.xlu0 %1558
      %1560 = vrot.lane.b32.xlu0 %v1550, 65
      %v1561 = vpop.permute.xlu0 %1560
      %1562 = vrot.lane.b32.xlu0 %v1551, 65
      %v1563 = vpop.permute.xlu0 %1562
      %1568 = vst.msk [vmem:[%s785] sm:$0xff] %vm812, %v1557
      %1569 = vst.msk [vmem:[%s785 + $0x8] sm:$0xff] %vm812, %v1559
      %1570 = vst.msk [vmem:[%s785 + $0x10] sm:$0xff] %vm812, %v1561
      %1571 = vst.msk [vmem:[%s785 + $0x18] sm:$0xff] %vm812, %v1563
      %p1572 = scmp.lt.s32.totalorder %s31, 1
      %s1573 = scalar_select %p1572, %s31, 1
      %p1574 = scmp.lt.s32.totalorder %s32, 0
      %s1575 = scalar_select %p1574, %s32, 0
      %s1576 = smul.addr %s1573, 4
      %s1577 = sadd.s32 %s1575, %s1576
      %s1578 = smul.addr %s1577, 8
      %s1579 = scalar_lea.vmem %s15, %s1578
      // Predicated region
      $region81: #{decoder_block_forward.2} parent=79 // pred_check
        %p1580 = pneg %p445
      $region82: #{decoder_block_forward.2} parent=79 // pred_check_branch
        %1582 = sbr.rel (%p1580) target = $region84
      $region83: #{decoder_block_forward.2} parent=79 // pred_region
        _
      $region84: #{decoder_block_forward.2} parent=79 // pred_fallthru
        _
    $region80: #{decoder_block_forward.2} parent=5 // pred_fallthru
      _
    %p1583 = scmp.le.s32.totalorder 2, %s22
    // Predicated region
    $region85: #{decoder_block_forward.2} parent=5 // pred_check
      %p1584 = pneg %p1583
    $region86: #{decoder_block_forward.2} parent=5 // pred_check_branch
      %1586 = sbr.rel (%p1584) target = $region88
    $region87: #{decoder_block_forward.2} parent=5 // pred_region
      %s1587 = ssub.s32 %s22, 2
      // Predicated region
      $region89: #{decoder_block_forward.2} parent=87 // pred_check
        %p1588 = pneg %p451
      $region90: #{decoder_block_forward.2} parent=87 // pred_check_branch
        %1590 = sbr.rel (%p1588) target = $region92
      $region91: #{decoder_block_forward.2} parent=87 // pred_region
        %p1591 = scmp.lt.s32.totalorder %s33, 1
        %s1592 = scalar_select %p1591, %s33, 1
        %p1593 = scmp.lt.s32.totalorder %s34, 0
        %s1594 = scalar_select %p1593, %s34, 0
        %s1595 = smul.addr %s1592, 4
        %s1596 = sadd.s32 %s1594, %s1595
        %s1597 = smul.addr %s1596, 8
        %s1598 = scalar_lea.vmem %s15, %s1597
      $region92: #{decoder_block_forward.2} parent=87 // pred_fallthru
        _
    $region88: #{decoder_block_forward.2} parent=5 // pred_fallthru
      _
  $region6: #{decoder_block_forward.2} parent=0 // loop_footer
    %s26 = sadd.s32 1, %s22
  $region7: #{decoder_block_forward.2} parent=0 // loop_footer_branch
    %21 = sbr.rel target = $region3
  $region8: #{decoder_block_forward.2} parent=0 // loop_exit
    _

</llo_original>
